<compile_context>
chip_gen: v7x
topology: tpu7x:2x2x1
jax: 0.10.0
libtpu: 0.0.40
codegen_flags: <defaults>
</compile_context>

<pallas_src>
import functools

import jax
import jax.numpy as jnp
from jax.experimental import pallas as pl
from jax.experimental.pallas import tpu as pltpu

_HI = jax.lax.Precision.HIGHEST
_LANES = 128
_BIAS_IN = 2            # the module hard-codes nn.Linear(2, bias_embed_size)
_TG_MAX = 256           # node groups per grid step (= 1024 nodes for E=32)


def _round_up(x, m):
    return (x + m - 1) // m * m


def _block_diag(mat, n):
    """n column/row-shifted copies of mat on the diagonal (built once, host side)."""
    r, c = mat.shape
    out = jnp.zeros((n * r, n * c), mat.dtype)
    for j in range(n):
        out = out.at[j * r:(j + 1) * r, j * c:(j + 1) * c].set(mat)
    return out


# ----------------------------------------------------------------------------
# Kernel: one tile of node groups
#   out = multihot(T) @ gather_table  +  X @ linear_table
# ----------------------------------------------------------------------------
def _node_embed_kernel(t_ref, x_ref, gtab_ref, ftab_ref, o_ref):
    t = t_ref[...]                                   # (TG, NPACK*4) int32, -1 = disabled
    tg = t.shape[0]
    kg = gtab_ref.shape[0]                           # NPACK * KG_slot
    lanes = jax.lax.broadcasted_iota(jnp.int32, (tg, kg), 1)
    # Multi-hot gather LHS: every target column lights exactly one lane
    # (columns are disjoint by construction; -1 never matches any lane).
    mh = (lanes == t[:, 0:1]).astype(jnp.float32)
    for f in range(1, t.shape[1]):
        mh = mh + (lanes == t[:, f:f + 1]).astype(jnp.float32)
    # One MXU dot for ALL embedding-table gathers of the tile (exact: one-hot).
    acc = jnp.dot(mh, gtab_ref[...],
                  preferred_element_type=jnp.float32, precision=_HI)
    # One MXU dot for both nn.Linear layers + their biases, both branches, all
    # node slots.  HIGHEST kept only to hold the 1e-5 check vs the f32
    # reference; relax to default precision if bf16-level error is acceptable.
    acc = acc + jnp.dot(x_ref[...], ftab_ref[...],
                        preferred_element_type=jnp.float32, precision=_HI)
    o_ref[...] = acc                                 # lane-dense (TG, NPACK*E) store


# ----------------------------------------------------------------------------
# One-time parameter fusion (hoisted out of the per-call traced path)
# ----------------------------------------------------------------------------
def _build_fused_tables(params):
    reg_table = jnp.asarray(params["reg_table"], jnp.float32)
    w_table = jnp.asarray(params["w_table"], jnp.float32)
    k_table = jnp.asarray(params["k_table"], jnp.float32)
    shape_w = jnp.asarray(params["shape_w"], jnp.float32)
    shape_b = jnp.asarray(params["shape_b"], jnp.float32)
    bias_w = jnp.asarray(params["bias_w"], jnp.float32)
    bias_b = jnp.asarray(params["bias_b"], jnp.float32)

    L = reg_table.shape[0]
    K = k_table.shape[0]
    S = shape_w.shape[0]
    Er, Ew, Es = reg_table.shape[1], w_table.shape[1], shape_w.shape[1]
    Ekh, Eb = k_table.shape[1], bias_w.shape[1]
    E = Er + Es
    assert E == Ew + Es + 2 * Ekh + Eb, "inconsistent embedding sizes"

    npack = _LANES // E if (E <= _LANES and _LANES % E == 0) else 1

    # Per-slot gather block (KG_slot, E):
    #   [weighted label table | kernel table (idx0) | kernel table (idx1) | regular label table]
    kg_slot = 2 * L + 2 * K
    g = jnp.zeros((kg_slot, E), jnp.float32)
    g = g.at[0:L, 0:Ew].set(w_table)
    g = g.at[L:L + K, Ew + Es:Ew + Es + Ekh].set(k_table)
    g = g.at[L + K:L + 2 * K, Ew + Es + Ekh:Ew + Es + 2 * Ekh].set(k_table)
    g = g.at[L + 2 * K:2 * L + 2 * K, 0:Er].set(reg_table)

    # Per-slot Linear block (KF_slot, E), rows match the packed X layout:
    #   [is_w, is_r, w_shapes(S), w_bias(2), r_shapes(S)]
    kf_slot = 4 + 2 * S
    f = jnp.zeros((kf_slot, E), jnp.float32)
    f = f.at[0, Ew:Ew + Es].set(shape_b)             # is_w -> weighted shape bias
    f = f.at[0, E - Eb:E].set(bias_b)                # is_w -> bias-linear bias
    f = f.at[1, Er:E].set(shape_b)                   # is_r -> regular shape bias
    f = f.at[2:2 + S, Ew:Ew + Es].set(shape_w)       # weighted shape Linear
    f = f.at[2 + S:2 + S + _BIAS_IN, E - Eb:E].set(bias_w)      # weighted bias Linear
    f = f.at[2 + S + _BIAS_IN:kf_slot, Er:E].set(shape_w)       # regular shape Linear

    # Block-diagonal expansion: NPACK column-shifted copies -> lane-dense output.
    gtab = _block_diag(g, npack)                     # (npack*KG_slot, npack*E)
    ftab = _block_diag(f, npack)                     # (npack*KF_slot, npack*E)

    dims = dict(L=L, K=K, S=S, E=E, npack=npack, kg_slot=kg_slot, kf_slot=kf_slot)
    return dict(gtab=gtab, ftab=ftab), dims


# ----------------------------------------------------------------------------
# Wrapper: pack inputs into compact slabs, tile, call the kernel
# ----------------------------------------------------------------------------
def _branch_rows(inds, shapes, kernels, bias, is_weighted, dims):
    L, K, S = dims["L"], dims["K"], dims["S"]
    B, N = inds.shape
    f32 = jnp.float32
    lab = inds.astype(jnp.int32)
    shp = shapes.astype(f32)
    one = jnp.ones((B, N, 1), f32)
    zero = jnp.zeros((B, N, 1), f32)
    if is_weighted:
        bia = bias.astype(f32)
        x = jnp.concatenate(
            [one, zero, shp, bia, jnp.zeros((B, N, S), f32)], axis=-1)
        k0 = kernels[..., 0].astype(jnp.int32)
        k1 = kernels[..., 1].astype(jnp.int32)
        t = jnp.stack([lab, L + k0, L + K + k1, jnp.full_like(lab, -1)], axis=-1)
    else:
        x = jnp.concatenate(
            [zero, one, jnp.zeros((B, N, S + _BIAS_IN), f32), shp], axis=-1)
        neg = jnp.full_like(lab, -1)
        t = jnp.stack([neg, neg, neg, L + 2 * K + lab], axis=-1)
    return x, t                                      # (B,N,KF_slot), (B,N,4)


def _forward(tabs, dims,
             regular_node_inds, regular_node_shapes,
             weighted_node_inds, weighted_node_shapes,
             weighted_node_kernels, weighted_node_bias):
    have_r = regular_node_inds is not None
    have_w = weighted_node_inds is not None
    if not have_r and not have_w:
        raise ValueError("Input to CGNodeEmbedding cannot both be None")

    E, npack = dims["E"], dims["npack"]
    kg_slot, kf_slot = dims["kg_slot"], dims["kf_slot"]

    xs, ts = [], []
    if have_w:                                       # weighted rows come first (torch.cat order)
        xw, tw = _branch_rows(weighted_node_inds, weighted_node_shapes,
                              weighted_node_kernels, weighted_node_bias, True, dims)
        xs.append(xw)
        ts.append(tw)
    if have_r:
        xr, tr = _branch_rows(regular_node_inds, regular_node_shapes,
                              None, None, False, dims)
        xs.append(xr)
        ts.append(tr)

    x = jnp.concatenate(xs, axis=1) if len(xs) > 1 else xs[0]
    t = jnp.concatenate(ts, axis=1) if len(ts) > 1 else ts[0]
    B, ntot = x.shape[0], x.shape[1]
    rows = B * ntot
    x = x.reshape(rows, kf_slot)
    t = t.reshape(rows, 4)

    # Pack NPACK nodes per 128-lane output row (pad rows -> zero output, sliced off).
    rows_p = _round_up(rows, npack)
    if rows_p > rows:
        x = jnp.pad(x, ((0, rows_p - rows), (0, 0)))
        t = jnp.pad(t, ((0, rows_p - rows), (0, 0)), constant_values=-1)
    groups = rows_p // npack
    x = x.reshape(groups, npack * kf_slot)
    t = t.reshape(groups, npack, 4)
    slot_off = (jnp.arange(npack, dtype=jnp.int32) * kg_slot)[None, :, None]
    t = jnp.where(t >= 0, t + slot_off, -1).reshape(groups, npack * 4)

    # Row-tile the grid; pad the group count to a whole number of tiles.
    tg = min(_TG_MAX, _round_up(groups, 8))
    groups_p = _round_up(groups, tg)
    if groups_p > groups:
        x = jnp.pad(x, ((0, groups_p - groups), (0, 0)))
        t = jnp.pad(t, ((0, groups_p - groups), (0, 0)), constant_values=-1)

    gtab, ftab = tabs["gtab"], tabs["ftab"]
    out = pl.pallas_call(
        _node_embed_kernel,
        out_shape=jax.ShapeDtypeStruct((groups_p, npack * E), jnp.float32),
        grid=(groups_p // tg,),
        in_specs=[
            pl.BlockSpec((tg, npack * 4), lambda i: (i, 0)),        # targets
            pl.BlockSpec((tg, npack * kf_slot), lambda i: (i, 0)),  # packed features
            pl.BlockSpec(gtab.shape, lambda i: (0, 0)),             # resident gather table
            pl.BlockSpec(ftab.shape, lambda i: (0, 0)),             # resident Linear table
        ],
        out_specs=pl.BlockSpec((tg, npack * E), lambda i: (i, 0)),
        compiler_params=pltpu.CompilerParams(
            dimension_semantics=("parallel",),
            vmem_limit_bytes=32 * 1024 * 1024,       # tile budget ~1 MiB; safe on v5e/v6e/v7x
        ),
    )(t, x, gtab, ftab)

    # (groups_p, npack*E) -> (rows, E) is a metadata reshape (+ slice iff padded).
    out = out.reshape(groups_p * npack, E)
    if groups_p * npack != rows:
        out = out[:rows]
    return out.reshape(B, ntot, E)


def make_cg_node_embedding(params):
    """Fuse the parameters once and return the forward callable."""
    tabs, dims = _build_fused_tables(params)
    return functools.partial(_forward, tabs, dims)


# ----------------------------------------------------------------------------
# Pure-JAX reference for verification
# ----------------------------------------------------------------------------
def reference(params, reg_inds, reg_shapes, w_inds, w_shapes, w_kernels, w_bias):
    hp = jax.lax.Precision.HIGHEST
    reg_emb = params["reg_table"][reg_inds]
    reg_shp = jnp.matmul(reg_shapes, params["shape_w"], precision=hp) + params["shape_b"]
    regular = jnp.concatenate([reg_emb, reg_shp], axis=-1)

    w_emb = params["w_table"][w_inds]
    k_emb = params["k_table"][w_kernels]             # (B, Nw, 2, Ek/2)
    k_emb = k_emb.reshape(k_emb.shape[0], k_emb.shape[1], -1)
    shp = jnp.matmul(w_shapes, params["shape_w"], precision=hp) + params["shape_b"]
    b_emb = jnp.matmul(w_bias, params["bias_w"], precision=hp) + params["bias_b"]
    weighted = jnp.concatenate([w_emb, shp, k_emb, b_emb], axis=-1)
    return jnp.concatenate([weighted, regular], axis=1)


# ----------------------------------------------------------------------------
# Main
# ----------------------------------------------------------------------------
if __name__ == "__main__":
    n_unique_labels = 16
    out_embed_size = 32
    shape_embed_size = 8
    kernel_embed_size = 8          # must be even
    bias_embed_size = 2
    n_unique_kernels = 8
    n_shape_vals = 6

    regular_out = out_embed_size - shape_embed_size                                          # 24
    weighted_out = out_embed_size - shape_embed_size - kernel_embed_size - bias_embed_size   # 14

    key = jax.random.PRNGKey(0)
    keys = jax.random.split(key, 13)

    params = {
        "reg_table": jax.random.normal(keys[0], (n_unique_labels, regular_out), jnp.float32),
        "w_table": jax.random.normal(keys[1], (n_unique_labels, weighted_out), jnp.float32),
        "k_table": jax.random.normal(keys[2], (n_unique_kernels, kernel_embed_size // 2), jnp.float32),
        "shape_w": jax.random.uniform(keys[3], (n_shape_vals, shape_embed_size),
                                      jnp.float32, -1.0 / n_shape_vals ** 0.5, 1.0 / n_shape_vals ** 0.5),
        "shape_b": jax.random.uniform(keys[4], (shape_embed_size,),
                                      jnp.float32, -1.0 / n_shape_vals ** 0.5, 1.0 / n_shape_vals ** 0.5),
        "bias_w": jax.random.uniform(keys[5], (2, bias_embed_size),
                                     jnp.float32, -1.0 / 2 ** 0.5, 1.0 / 2 ** 0.5),
        "bias_b": jax.random.uniform(keys[6], (bias_embed_size,),
                                     jnp.float32, -1.0 / 2 ** 0.5, 1.0 / 2 ** 0.5),
    }

    B, Nr, Nw = 2, 8, 8
    regular_node_inds = jax.random.randint(keys[7], (B, Nr), 0, n_unique_labels, jnp.int32)
    regular_node_shapes = jax.random.normal(keys[8], (B, Nr, n_shape_vals), jnp.float32)
    weighted_node_inds = jax.random.randint(keys[9], (B, Nw), 0, n_unique_labels, jnp.int32)
    weighted_node_shapes = jax.random.normal(keys[10], (B, Nw, n_shape_vals), jnp.float32)
    weighted_node_kernels = jax.random.randint(keys[11], (B, Nw, 2), 0, n_unique_kernels, jnp.int32)
    weighted_node_bias = jax.random.normal(keys[12], (B, Nw, 2), jnp.float32)

    fwd = jax.jit(make_cg_node_embedding(params))    # fused tables built once, closed over
    out = fwd(regular_node_inds, regular_node_shapes,
              weighted_node_inds, weighted_node_shapes,
              weighted_node_kernels, weighted_node_bias)
    out = jax.block_until_ready(out)

    ref = reference(params, regular_node_inds, regular_node_shapes,
                    weighted_node_inds, weighted_node_shapes,
                    weighted_node_kernels, weighted_node_bias)

    assert out.shape == (B, Nw + Nr, out_embed_size), out.shape
    assert jnp.allclose(out, ref, atol=1e-5, rtol=1e-5), \
        float(jnp.max(jnp.abs(out - ref)))

    print("KERNEL_OK")
</pallas_src>

<mosaic_0001>
module attributes {stable_mosaic.version = 11 : i64} {
  func.func @_node_embed_kernel(%arg0: i32, %arg1: memref<8x16xi32, #tpu.memory_space<vmem>>, %arg2: memref<8x64xf32, #tpu.memory_space<vmem>>, %arg3: memref<192x128xf32, #tpu.memory_space<vmem>>, %arg4: memref<64x128xf32, #tpu.memory_space<vmem>>, %arg5: memref<8x128xf32, #tpu.memory_space<vmem>>) attributes {dimension_semantics = [#tpu.dimension_semantics<parallel>], iteration_bounds = array<i64: 1>, scalar_prefetch = 0 : i64, scratch_operands = 0 : i64, tpu.core_type = #tpu.core_type<tc>, window_params = [{transform_indices = @transform_0, window_bounds = array<i64: 8, 16>}, {transform_indices = @transform_1, window_bounds = array<i64: 8, 64>}, {pipeline_mode = #tpu.pipeline_mode<synchronous>, transform_indices = @transform_2, window_bounds = array<i64: 192, 128>}, {pipeline_mode = #tpu.pipeline_mode<synchronous>, transform_indices = @transform_3, window_bounds = array<i64: 64, 128>}, {transform_indices = @transform_4, window_bounds = array<i64: 8, 128>}]} {
    %c0 = arith.constant 0 : index
    %c0_0 = arith.constant 0 : index
    %0 = vector.load %arg1[%c0, %c0_0] : memref<8x16xi32, #tpu.memory_space<vmem>>, vector<8x16xi32>
    %1 = tpu.iota {dimensions = array<i32: 1>} : vector<8x192xi32>
    %2 = vector.extract_strided_slice %0 {offsets = [0, 0], sizes = [8, 1], strides = [1, 1]} : vector<8x16xi32> to vector<8x1xi32>
    %3 = vector.broadcast %2 : vector<8x1xi32> to vector<8x192xi32>
    %4 = arith.cmpi eq, %1, %3 : vector<8x192xi32>
    %5 = arith.extui %4 : vector<8x192xi1> to vector<8x192xi32>
    %6 = arith.sitofp %5 : vector<8x192xi32> to vector<8x192xf32>
    %7 = vector.extract_strided_slice %0 {offsets = [0, 1], sizes = [8, 1], strides = [1, 1]} : vector<8x16xi32> to vector<8x1xi32>
    %8 = vector.broadcast %7 : vector<8x1xi32> to vector<8x192xi32>
    %9 = arith.cmpi eq, %1, %8 : vector<8x192xi32>
    %10 = arith.extui %9 : vector<8x192xi1> to vector<8x192xi32>
    %11 = arith.sitofp %10 : vector<8x192xi32> to vector<8x192xf32>
    %12 = arith.addf %6, %11 : vector<8x192xf32>
    %13 = vector.extract_strided_slice %0 {offsets = [0, 2], sizes = [8, 1], strides = [1, 1]} : vector<8x16xi32> to vector<8x1xi32>
    %14 = vector.broadcast %13 : vector<8x1xi32> to vector<8x192xi32>
    %15 = arith.cmpi eq, %1, %14 : vector<8x192xi32>
    %16 = arith.extui %15 : vector<8x192xi1> to vector<8x192xi32>
    %17 = arith.sitofp %16 : vector<8x192xi32> to vector<8x192xf32>
    %18 = arith.addf %12, %17 : vector<8x192xf32>
    %19 = vector.extract_strided_slice %0 {offsets = [0, 3], sizes = [8, 1], strides = [1, 1]} : vector<8x16xi32> to vector<8x1xi32>
    %20 = vector.broadcast %19 : vector<8x1xi32> to vector<8x192xi32>
    %21 = arith.cmpi eq, %1, %20 : vector<8x192xi32>
    %22 = arith.extui %21 : vector<8x192xi1> to vector<8x192xi32>
    %23 = arith.sitofp %22 : vector<8x192xi32> to vector<8x192xf32>
    %24 = arith.addf %18, %23 : vector<8x192xf32>
    %25 = vector.extract_strided_slice %0 {offsets = [0, 4], sizes = [8, 1], strides = [1, 1]} : vector<8x16xi32> to vector<8x1xi32>
    %26 = vector.broadcast %25 : vector<8x1xi32> to vector<8x192xi32>
    %27 = arith.cmpi eq, %1, %26 : vector<8x192xi32>
    %28 = arith.extui %27 : vector<8x192xi1> to vector<8x192xi32>
    %29 = arith.sitofp %28 : vector<8x192xi32> to vector<8x192xf32>
    %30 = arith.addf %24, %29 : vector<8x192xf32>
    %31 = vector.extract_strided_slice %0 {offsets = [0, 5], sizes = [8, 1], strides = [1, 1]} : vector<8x16xi32> to vector<8x1xi32>
    %32 = vector.broadcast %31 : vector<8x1xi32> to vector<8x192xi32>
    %33 = arith.cmpi eq, %1, %32 : vector<8x192xi32>
    %34 = arith.extui %33 : vector<8x192xi1> to vector<8x192xi32>
    %35 = arith.sitofp %34 : vector<8x192xi32> to vector<8x192xf32>
    %36 = arith.addf %30, %35 : vector<8x192xf32>
    %37 = vector.extract_strided_slice %0 {offsets = [0, 6], sizes = [8, 1], strides = [1, 1]} : vector<8x16xi32> to vector<8x1xi32>
    %38 = vector.broadcast %37 : vector<8x1xi32> to vector<8x192xi32>
    %39 = arith.cmpi eq, %1, %38 : vector<8x192xi32>
    %40 = arith.extui %39 : vector<8x192xi1> to vector<8x192xi32>
    %41 = arith.sitofp %40 : vector<8x192xi32> to vector<8x192xf32>
    %42 = arith.addf %36, %41 : vector<8x192xf32>
    %43 = vector.extract_strided_slice %0 {offsets = [0, 7], sizes = [8, 1], strides = [1, 1]} : vector<8x16xi32> to vector<8x1xi32>
    %44 = vector.broadcast %43 : vector<8x1xi32> to vector<8x192xi32>
    %45 = arith.cmpi eq, %1, %44 : vector<8x192xi32>
    %46 = arith.extui %45 : vector<8x192xi1> to vector<8x192xi32>
    %47 = arith.sitofp %46 : vector<8x192xi32> to vector<8x192xf32>
    %48 = arith.addf %42, %47 : vector<8x192xf32>
    %49 = vector.extract_strided_slice %0 {offsets = [0, 8], sizes = [8, 1], strides = [1, 1]} : vector<8x16xi32> to vector<8x1xi32>
    %50 = vector.broadcast %49 : vector<8x1xi32> to vector<8x192xi32>
    %51 = arith.cmpi eq, %1, %50 : vector<8x192xi32>
    %52 = arith.extui %51 : vector<8x192xi1> to vector<8x192xi32>
    %53 = arith.sitofp %52 : vector<8x192xi32> to vector<8x192xf32>
    %54 = arith.addf %48, %53 : vector<8x192xf32>
    %55 = vector.extract_strided_slice %0 {offsets = [0, 9], sizes = [8, 1], strides = [1, 1]} : vector<8x16xi32> to vector<8x1xi32>
    %56 = vector.broadcast %55 : vector<8x1xi32> to vector<8x192xi32>
    %57 = arith.cmpi eq, %1, %56 : vector<8x192xi32>
    %58 = arith.extui %57 : vector<8x192xi1> to vector<8x192xi32>
    %59 = arith.sitofp %58 : vector<8x192xi32> to vector<8x192xf32>
    %60 = arith.addf %54, %59 : vector<8x192xf32>
    %61 = vector.extract_strided_slice %0 {offsets = [0, 10], sizes = [8, 1], strides = [1, 1]} : vector<8x16xi32> to vector<8x1xi32>
    %62 = vector.broadcast %61 : vector<8x1xi32> to vector<8x192xi32>
    %63 = arith.cmpi eq, %1, %62 : vector<8x192xi32>
    %64 = arith.extui %63 : vector<8x192xi1> to vector<8x192xi32>
    %65 = arith.sitofp %64 : vector<8x192xi32> to vector<8x192xf32>
    %66 = arith.addf %60, %65 : vector<8x192xf32>
    %67 = vector.extract_strided_slice %0 {offsets = [0, 11], sizes = [8, 1], strides = [1, 1]} : vector<8x16xi32> to vector<8x1xi32>
    %68 = vector.broadcast %67 : vector<8x1xi32> to vector<8x192xi32>
    %69 = arith.cmpi eq, %1, %68 : vector<8x192xi32>
    %70 = arith.extui %69 : vector<8x192xi1> to vector<8x192xi32>
    %71 = arith.sitofp %70 : vector<8x192xi32> to vector<8x192xf32>
    %72 = arith.addf %66, %71 : vector<8x192xf32>
    %73 = vector.extract_strided_slice %0 {offsets = [0, 12], sizes = [8, 1], strides = [1, 1]} : vector<8x16xi32> to vector<8x1xi32>
    %74 = vector.broadcast %73 : vector<8x1xi32> to vector<8x192xi32>
    %75 = arith.cmpi eq, %1, %74 : vector<8x192xi32>
    %76 = arith.extui %75 : vector<8x192xi1> to vector<8x192xi32>
    %77 = arith.sitofp %76 : vector<8x192xi32> to vector<8x192xf32>
    %78 = arith.addf %72, %77 : vector<8x192xf32>
    %79 = vector.extract_strided_slice %0 {offsets = [0, 13], sizes = [8, 1], strides = [1, 1]} : vector<8x16xi32> to vector<8x1xi32>
    %80 = vector.broadcast %79 : vector<8x1xi32> to vector<8x192xi32>
    %81 = arith.cmpi eq, %1, %80 : vector<8x192xi32>
    %82 = arith.extui %81 : vector<8x192xi1> to vector<8x192xi32>
    %83 = arith.sitofp %82 : vector<8x192xi32> to vector<8x192xf32>
    %84 = arith.addf %78, %83 : vector<8x192xf32>
    %85 = vector.extract_strided_slice %0 {offsets = [0, 14], sizes = [8, 1], strides = [1, 1]} : vector<8x16xi32> to vector<8x1xi32>
    %86 = vector.broadcast %85 : vector<8x1xi32> to vector<8x192xi32>
    %87 = arith.cmpi eq, %1, %86 : vector<8x192xi32>
    %88 = arith.extui %87 : vector<8x192xi1> to vector<8x192xi32>
    %89 = arith.sitofp %88 : vector<8x192xi32> to vector<8x192xf32>
    %90 = arith.addf %84, %89 : vector<8x192xf32>
    %91 = vector.extract_strided_slice %0 {offsets = [0, 15], sizes = [8, 1], strides = [1, 1]} : vector<8x16xi32> to vector<8x1xi32>
    %92 = vector.broadcast %91 : vector<8x1xi32> to vector<8x192xi32>
    %93 = arith.cmpi eq, %1, %92 : vector<8x192xi32>
    %94 = arith.extui %93 : vector<8x192xi1> to vector<8x192xi32>
    %95 = arith.sitofp %94 : vector<8x192xi32> to vector<8x192xf32>
    %96 = arith.addf %90, %95 : vector<8x192xf32>
    %c0_1 = arith.constant 0 : index
    %c0_2 = arith.constant 0 : index
    %97 = vector.load %arg3[%c0_1, %c0_2] : memref<192x128xf32, #tpu.memory_space<vmem>>, vector<192x128xf32>
    %cst = arith.constant dense<0.000000e+00> : vector<8x128xf32>
    %98 = tpu.matmul %96, %97, %cst {dimension_numbers = #tpu.dot_dimension_numbers<[1], [0], [0], [1], [0, 0, 1, 1], [], []>, precision = #tpu.contract_precision<fp32>} : vector<8x192xf32>, vector<192x128xf32>, vector<8x128xf32> -> vector<8x128xf32>
    %c0_3 = arith.constant 0 : index
    %c0_4 = arith.constant 0 : index
    %99 = vector.load %arg2[%c0_3, %c0_4] : memref<8x64xf32, #tpu.memory_space<vmem>>, vector<8x64xf32>
    %c0_5 = arith.constant 0 : index
    %c0_6 = arith.constant 0 : index
    %100 = vector.load %arg4[%c0_5, %c0_6] : memref<64x128xf32, #tpu.memory_space<vmem>>, vector<64x128xf32>
    %cst_7 = arith.constant dense<0.000000e+00> : vector<8x128xf32>
    %101 = tpu.matmul %99, %100, %cst_7 {dimension_numbers = #tpu.dot_dimension_numbers<[1], [0], [0], [1], [0, 0, 1, 1], [], []>, precision = #tpu.contract_precision<fp32>} : vector<8x64xf32>, vector<64x128xf32>, vector<8x128xf32> -> vector<8x128xf32>
    %102 = arith.addf %98, %101 : vector<8x128xf32>
    %c0_8 = arith.constant 0 : index
    %c0_9 = arith.constant 0 : index
    %103 = vector.load %arg5[%c0_8, %c0_9] : memref<8x128xf32, #tpu.memory_space<vmem>>, vector<8x128xf32>
    tpu.vector_store %arg5[%c0_8, %c0_9], %102 {strides = array<i32>} : memref<8x128xf32, #tpu.memory_space<vmem>>, vector<8x128xf32>,
    return
  }
  func.func @transform_0(%arg0: i32) -> (i32, i32) {
    %c0_i32 = arith.constant 0 : i32
    %c0_i32_0 = arith.constant 0 : i32
    return %arg0, %c0_i32 : i32, i32
  }
  func.func @transform_1(%arg0: i32) -> (i32, i32) {
    %c0_i32 = arith.constant 0 : i32
    %c0_i32_0 = arith.constant 0 : i32
    return %arg0, %c0_i32 : i32, i32
  }
  func.func @transform_2(%arg0: i32) -> (i32, i32) {
    %c0_i32 = arith.constant 0 : i32
    %c0_i32_0 = arith.constant 0 : i32
    %c0_i32_1 = arith.constant 0 : i32
    return %c0_i32, %c0_i32_0 : i32, i32
  }
  func.func @transform_3(%arg0: i32) -> (i32, i32) {
    %c0_i32 = arith.constant 0 : i32
    %c0_i32_0 = arith.constant 0 : i32
    %c0_i32_1 = arith.constant 0 : i32
    return %c0_i32, %c0_i32_0 : i32, i32
  }
  func.func @transform_4(%arg0: i32) -> (i32, i32) {
    %c0_i32 = arith.constant 0 : i32
    %c0_i32_0 = arith.constant 0 : i32
    return %arg0, %c0_i32 : i32, i32
  }
}

</mosaic_0001>

<llo_original>
// kernel: _forward.1
$region0: #{_forward.1}
  #allocation0 [shape = 'u32[]', space=smem, size = 0x4, offset = 0x4, fixed_abs, tag = 'smem constant byte address 0x4 - core index']
  #allocation1 [shape = 'u32[144,128]{1,0:T(1,128)}', space=vmem, size = 0x12000, scoped, tag = 'internal scratch']
  %s0 = inlined_call_operand.vmem [shape: s32[8,16], index: 0, kind: input, shape index: {}]
  %s1 = inlined_call_operand.vmem [shape: f32[8,64], index: 1, kind: input, shape index: {}]
  %s2 = inlined_call_operand.vmem [shape: f32[192,128], index: 2, kind: input, shape index: {}]
  %s3 = inlined_call_operand.vmem [shape: f32[64,128], index: 3, kind: input, shape index: {}]
  %s4 = inlined_call_operand.vmem [shape: f32[8,128], index: 4, kind: output, shape index: {}]
  %s5 = sld [smem:[#allocation0]]
  $region26: #{_forward.1} parent=0
    _
  %s7 = ssub.s32 1, %s5
  %s8 = scalar_select 0, %s7, %s5
  // Predicated region
  $region2: #{_forward.1} parent=0 // pred_check
    _
  $region3: #{_forward.1} parent=0 // pred_check_branch
    %10 = sbr.rel (0) target = $region5
  $region4: #{_forward.1} parent=0 // pred_region
    _
  $region5: #{_forward.1} parent=0 // pred_fallthru
    _
  // Predicated region
  $region6: #{_forward.1} parent=0 // pred_check
    _
  $region7: #{_forward.1} parent=0 // pred_check_branch
    %12 = sbr.rel (0) target = $region9
  $region8: #{_forward.1} parent=0 // pred_region
    _
  $region9: #{_forward.1} parent=0 // pred_fallthru
    _
  // Predicated region
  $region10: #{_forward.1} parent=0 // pred_check
    _
  $region11: #{_forward.1} parent=0 // pred_check_branch
    %14 = sbr.rel (0) target = $region13
  $region12: #{_forward.1} parent=0 // pred_region
    _
  $region13: #{_forward.1} parent=0 // pred_fallthru
    _
  // Predicated region
  $region14: #{_forward.1} parent=0 // pred_check
    _
  $region15: #{_forward.1} parent=0 // pred_check_branch
    %16 = sbr.rel (0) target = $region17
  $region16: #{_forward.1} parent=0 // pred_region
    _
  $region17: #{_forward.1} parent=0 // pred_fallthru
    _
  %v17 = vld [vmem:[%s0] sm:$0xff]
  %v18 = vlaneseq
  %v19 = vand.u32 %v18, 127
  %v20 = vadd.s32 %v19, 128
  %21 = vset.pattern.permute.xlu0 0
  %22 = vperm.xlu0 %21, %v17
  %v23 = vpop.permute.xlu0 %22
  %vm24 = vcmp.eq.s32.totalorder %v19, %v23
  %vm25 = vcmp.eq.s32.totalorder %v20, %v23
  %v26 = vsel %vm24, 1, 0
  %v27 = vsel %vm25, 1, 0
  %v28 = vcvt.s32.f32 %v26
  %v29 = vcvt.s32.f32 %v27
  %30 = vset.pattern.permute.xlu0 1
  %31 = vperm.xlu0 %30, %v17
  %v32 = vpop.permute.xlu0 %31
  %vm33 = vcmp.eq.s32.totalorder %v19, %v32
  %vm34 = vcmp.eq.s32.totalorder %v20, %v32
  %v35 = vsel %vm33, 1, 0
  %v36 = vsel %vm34, 1, 0
  %v37 = vcvt.s32.f32 %v35
  %v38 = vcvt.s32.f32 %v36
  %v39 = vadd.f32 %v28, %v37
  %v40 = vadd.f32 %v29, %v38
  %41 = vset.pattern.permute.xlu0 2
  %42 = vperm.xlu0 %41, %v17
  %v43 = vpop.permute.xlu0 %42
  %vm44 = vcmp.eq.s32.totalorder %v19, %v43
  %vm45 = vcmp.eq.s32.totalorder %v20, %v43
  %v46 = vsel %vm44, 1, 0
  %v47 = vsel %vm45, 1, 0
  %v48 = vcvt.s32.f32 %v46
  %v49 = vcvt.s32.f32 %v47
  %v50 = vadd.f32 %v39, %v48
  %v51 = vadd.f32 %v40, %v49
  %52 = vset.pattern.permute.xlu0 3
  %53 = vperm.xlu0 %52, %v17
  %v54 = vpop.permute.xlu0 %53
  %vm55 = vcmp.eq.s32.totalorder %v19, %v54
  %vm56 = vcmp.eq.s32.totalorder %v20, %v54
  %v57 = vsel %vm55, 1, 0
  %v58 = vsel %vm56, 1, 0
  %v59 = vcvt.s32.f32 %v57
  %v60 = vcvt.s32.f32 %v58
  %v61 = vadd.f32 %v50, %v59
  %v62 = vadd.f32 %v51, %v60
  %63 = vset.pattern.permute.xlu0 4
  %64 = vperm.xlu0 %63, %v17
  %v65 = vpop.permute.xlu0 %64
  %vm66 = vcmp.eq.s32.totalorder %v19, %v65
  %vm67 = vcmp.eq.s32.totalorder %v20, %v65
  %v68 = vsel %vm66, 1, 0
  %v69 = vsel %vm67, 1, 0
  %v70 = vcvt.s32.f32 %v68
  %v71 = vcvt.s32.f32 %v69
  %v72 = vadd.f32 %v61, %v70
  %v73 = vadd.f32 %v62, %v71
  %74 = vset.pattern.permute.xlu0 5
  %75 = vperm.xlu0 %74, %v17
  %v76 = vpop.permute.xlu0 %75
  %vm77 = vcmp.eq.s32.totalorder %v19, %v76
  %vm78 = vcmp.eq.s32.totalorder %v20, %v76
  %v79 = vsel %vm77, 1, 0
  %v80 = vsel %vm78, 1, 0
  %v81 = vcvt.s32.f32 %v79
  %v82 = vcvt.s32.f32 %v80
  %v83 = vadd.f32 %v72, %v81
  %v84 = vadd.f32 %v73, %v82
  %85 = vset.pattern.permute.xlu0 6
  %86 = vperm.xlu0 %85, %v17
  %v87 = vpop.permute.xlu0 %86
  %vm88 = vcmp.eq.s32.totalorder %v19, %v87
  %vm89 = vcmp.eq.s32.totalorder %v20, %v87
  %v90 = vsel %vm88, 1, 0
  %v91 = vsel %vm89, 1, 0
  %v92 = vcvt.s32.f32 %v90
  %v93 = vcvt.s32.f32 %v91
  %v94 = vadd.f32 %v83, %v92
  %v95 = vadd.f32 %v84, %v93
  %96 = vset.pattern.permute.xlu0 7
  %97 = vperm.xlu0 %96, %v17
  %v98 = vpop.permute.xlu0 %97
  %vm99 = vcmp.eq.s32.totalorder %v19, %v98
  %vm100 = vcmp.eq.s32.totalorder %v20, %v98
  %v101 = vsel %vm99, 1, 0
  %v102 = vsel %vm100, 1, 0
  %v103 = vcvt.s32.f32 %v101
  %v104 = vcvt.s32.f32 %v102
  %v105 = vadd.f32 %v94, %v103
  %v106 = vadd.f32 %v95, %v104
  %107 = vset.pattern.permute.xlu0 8
  %108 = vperm.xlu0 %107, %v17
  %v109 = vpop.permute.xlu0 %108
  %vm110 = vcmp.eq.s32.totalorder %v19, %v109
  %vm111 = vcmp.eq.s32.totalorder %v20, %v109
  %v112 = vsel %vm110, 1, 0
  %v113 = vsel %vm111, 1, 0
  %v114 = vcvt.s32.f32 %v112
  %v115 = vcvt.s32.f32 %v113
  %v116 = vadd.f32 %v105, %v114
  %v117 = vadd.f32 %v106, %v115
  %118 = vset.pattern.permute.xlu0 9
  %119 = vperm.xlu0 %118, %v17
  %v120 = vpop.permute.xlu0 %119
  %vm121 = vcmp.eq.s32.totalorder %v19, %v120
  %vm122 = vcmp.eq.s32.totalorder %v20, %v120
  %v123 = vsel %vm121, 1, 0
  %v124 = vsel %vm122, 1, 0
  %v125 = vcvt.s32.f32 %v123
  %v126 = vcvt.s32.f32 %v124
  %v127 = vadd.f32 %v116, %v125
  %v128 = vadd.f32 %v117, %v126
  %129 = vset.pattern.permute.xlu0 10
  %130 = vperm.xlu0 %129, %v17
  %v131 = vpop.permute.xlu0 %130
  %vm132 = vcmp.eq.s32.totalorder %v19, %v131
  %vm133 = vcmp.eq.s32.totalorder %v20, %v131
  %v134 = vsel %vm132, 1, 0
  %v135 = vsel %vm133, 1, 0
  %v136 = vcvt.s32.f32 %v134
  %v137 = vcvt.s32.f32 %v135
  %v138 = vadd.f32 %v127, %v136
  %v139 = vadd.f32 %v128, %v137
  %140 = vset.pattern.permute.xlu0 11
  %141 = vperm.xlu0 %140, %v17
  %v142 = vpop.permute.xlu0 %141
  %vm143 = vcmp.eq.s32.totalorder %v19, %v142
  %vm144 = vcmp.eq.s32.totalorder %v20, %v142
  %v145 = vsel %vm143, 1, 0
  %v146 = vsel %vm144, 1, 0
  %v147 = vcvt.s32.f32 %v145
  %v148 = vcvt.s32.f32 %v146
  %v149 = vadd.f32 %v138, %v147
  %v150 = vadd.f32 %v139, %v148
  %151 = vset.pattern.permute.xlu0 12
  %152 = vperm.xlu0 %151, %v17
  %v153 = vpop.permute.xlu0 %152
  %vm154 = vcmp.eq.s32.totalorder %v19, %v153
  %vm155 = vcmp.eq.s32.totalorder %v20, %v153
  %v156 = vsel %vm154, 1, 0
  %v157 = vsel %vm155, 1, 0
  %v158 = vcvt.s32.f32 %v156
  %v159 = vcvt.s32.f32 %v157
  %v160 = vadd.f32 %v149, %v158
  %v161 = vadd.f32 %v150, %v159
  %162 = vset.pattern.permute.xlu0 13
  %163 = vperm.xlu0 %162, %v17
  %v164 = vpop.permute.xlu0 %163
  %vm165 = vcmp.eq.s32.totalorder %v19, %v164
  %vm166 = vcmp.eq.s32.totalorder %v20, %v164
  %v167 = vsel %vm165, 1, 0
  %v168 = vsel %vm166, 1, 0
  %v169 = vcvt.s32.f32 %v167
  %v170 = vcvt.s32.f32 %v168
  %v171 = vadd.f32 %v160, %v169
  %v172 = vadd.f32 %v161, %v170
  %173 = vset.pattern.permute.xlu0 14
  %174 = vperm.xlu0 %173, %v17
  %v175 = vpop.permute.xlu0 %174
  %vm176 = vcmp.eq.s32.totalorder %v19, %v175
  %vm177 = vcmp.eq.s32.totalorder %v20, %v175
  %v178 = vsel %vm176, 1, 0
  %v179 = vsel %vm177, 1, 0
  %v180 = vcvt.s32.f32 %v178
  %v181 = vcvt.s32.f32 %v179
  %v182 = vadd.f32 %v171, %v180
  %v183 = vadd.f32 %v172, %v181
  %184 = vset.pattern.permute.xlu0 15
  %185 = vperm.xlu0 %184, %v17
  %v186 = vpop.permute.xlu0 %185
  %vm187 = vcmp.eq.s32.totalorder %v19, %v186
  %vm188 = vcmp.eq.s32.totalorder %v20, %v186
  %v189 = vsel %vm187, 1, 0
  %v190 = vsel %vm188, 1, 0
  %v191 = vcvt.s32.f32 %v189
  %v192 = vcvt.s32.f32 %v190
  %v193 = vadd.f32 %v182, %v191
  %v194 = vadd.f32 %v183, %v192
  %v195 = vld [vmem:[%s2] sm:$0xff]
  %v196 = vld [vmem:[%s2 + $0x8] sm:$0xff]
  %v197 = vld [vmem:[%s2 + $0x10] sm:$0xff]
  %v198 = vld [vmem:[%s2 + $0x18] sm:$0xff]
  %v199 = vld [vmem:[%s2 + $0x20] sm:$0xff]
  %v200 = vld [vmem:[%s2 + $0x28] sm:$0xff]
  %v201 = vld [vmem:[%s2 + $0x30] sm:$0xff]
  %v202 = vld [vmem:[%s2 + $0x38] sm:$0xff]
  %v203 = vld [vmem:[%s2 + $0x40] sm:$0xff]
  %v204 = vld [vmem:[%s2 + $0x48] sm:$0xff]
  %v205 = vld [vmem:[%s2 + $0x50] sm:$0xff]
  %v206 = vld [vmem:[%s2 + $0x58] sm:$0xff]
  %v207 = vld [vmem:[%s2 + $0x60] sm:$0xff]
  %v208 = vld [vmem:[%s2 + $0x68] sm:$0xff]
  %v209 = vld [vmem:[%s2 + $0x70] sm:$0xff]
  %v210 = vld [vmem:[%s2 + $0x78] sm:$0xff]
  %v211 = vld [vmem:[%s2 + $0x80] sm:$0xff]
  %v212 = vld [vmem:[%s2 + $0x88] sm:$0xff]
  %v213 = vld [vmem:[%s2 + $0x90] sm:$0xff]
  %v214 = vld [vmem:[%s2 + $0x98] sm:$0xff]
  %v215 = vld [vmem:[%s2 + $0xa0] sm:$0xff]
  %v216 = vld [vmem:[%s2 + $0xa8] sm:$0xff]
  %v217 = vld [vmem:[%s2 + $0xb0] sm:$0xff]
  %v218 = vld [vmem:[%s2 + $0xb8] sm:$0xff]
  %v219 = vld [vmem:[%s1] sm:$0xff]
  %v220 = vld [vmem:[%s3] sm:$0xff]
  %v221 = vld [vmem:[%s3 + $0x8] sm:$0xff]
  %v222 = vld [vmem:[%s3 + $0x10] sm:$0xff]
  %v223 = vld [vmem:[%s3 + $0x18] sm:$0xff]
  %v224 = vld [vmem:[%s3 + $0x20] sm:$0xff]
  %v225 = vld [vmem:[%s3 + $0x28] sm:$0xff]
  %v226 = vld [vmem:[%s3 + $0x30] sm:$0xff]
  %v227 = vld [vmem:[%s3 + $0x38] sm:$0xff]
  %vm228 = vcmask 523264
  %v230 = vsel %vm228, %v219, 0
  %232 = vmatprep.subr.mxu0 0.0
  %v233 = vand.u32 %v220, 4294901760
  %234 = vmatpush1.msra.mxu0 %v233
  %235 = vmatprep.subr.mxu0 0.0
  %v236 = vand.u32 %v221, 4294901760
  %237 = vmatpush1.msra.mxu0 %v236
  %238 = vmatprep.subr.mxu0 0.0
  %v239 = vand.u32 %v222, 4294901760
  %240 = vmatpush1.msra.mxu0 %v239
  %241 = vmatprep.subr.mxu0 0.0
  %v242 = vand.u32 %v223, 4294901760
  %243 = vmatpush1.msra.mxu0 %v242
  %244 = vmatprep.subr.mxu0 0.0
  %v245 = vand.u32 %v224, 4294901760
  %246 = vmatpush1.msra.mxu0 %v245
  %247 = vmatprep.subr.mxu0 0.0
  %v248 = vand.u32 %v225, 4294901760
  %249 = vmatpush1.msra.mxu0 %v248
  %250 = vmatprep.subr.mxu0 0.0
  %v251 = vand.u32 %v226, 4294901760
  %252 = vmatpush1.msra.mxu0 %v251
  %253 = vmatprep.subr.mxu0 0.0
  %v254 = vand.u32 %v227, 4294901760
  %255 = vmatpush1.msra.mxu0 %v254
  %256 = vmatprep.subr.mxu0 0.0
  %257 = vmatpush1.msra.mxu0 0.0
  %258 = vmatprep.subr.mxu0 0.0
  %259 = vmatpush1.msra.mxu0 0.0
  %260 = vmatprep.subr.mxu0 0.0
  %261 = vmatpush1.msra.mxu0 0.0
  %262 = vmatprep.subr.mxu0 0.0
  %263 = vmatpush1.msra.mxu0 0.0
  %264 = vmatprep.subr.mxu0 0.0
  %265 = vmatpush1.msra.mxu0 0.0
  %266 = vmatprep.subr.mxu0 0.0
  %267 = vmatpush1.msra.mxu0 0.0
  %268 = vmatprep.subr.mxu0 0.0
  %269 = vmatpush1.msra.mxu0 0.0
  %270 = vmatprep.subr.mxu0 0.0
  %271 = vmatpush1.msra.mxu0 0.0
  %272 = vmatprep.subr.mxu0 0.0
  %273 = vmatpush1.msra.mxu0 0.0
  %274 = vmatprep.subr.mxu0 0.0
  %275 = vmatpush1.msra.mxu0 0.0
  %276 = vmatprep.subr.mxu0 0.0
  %277 = vmatpush1.msra.mxu0 0.0
  %278 = vmatprep.subr.mxu0 0.0
  %279 = vmatpush1.msra.mxu0 0.0
  %280 = vmatprep.subr.mxu0 0.0
  %281 = vmatpush1.msra.mxu0 0.0
  %282 = vmatprep.subr.mxu0 0.0
  %283 = vmatpush1.msra.mxu0 0.0
  %284 = vmatprep.subr.mxu0 0.0
  %285 = vmatpush1.msra.mxu0 0.0
  %286 = vmatprep.subr.mxu0 0.0
  %287 = vmatpush1.msra.mxu0 0.0
  %288 = vmatprep.subr.mxu0 0.0
  %289 = vmatpush1.msra.mxu0 0.0
  %290 = vmatprep.subr.mxu0 0.0
  %291 = vmatpush1.msra.mxu0 0.0
  %292 = vmatprep.subr.mxu0 0.0
  %293 = vmatpush1.msra.mxu0 0.0
  %294 = vmatprep.subr.mxu0 0.0
  %295 = vmatpush1.msra.mxu0 0.0
  %296 = vmatprep.subr.mxu0 0.0
  %297 = vmatpush1.msra.mxu0 0.0
  %298 = vmatprep.subr.mxu0 0.0
  %299 = vmatpush1.msra.mxu0 0.0
  %300 = vmatprep.subr.mxu0 0.0
  %301 = vmatpush1.msra.mxu0 0.0
  %302 = vmatprep.subr.mxu0 0.0
  %303 = vmatpush1.msra.mxu0 0.0
  %304 = vmatprep.mubr.f32.mxu0 0.0
  %v305 = vand.u32 %v230, 4294901760
  %v306 = vsub.f32 %v230, %v305
  %v307 = vand.u32 %v306, 4294901760
  %v308 = vsub.f32 %v306, %v307
  %v309 = vand.u32 %v308, 4294901760
  %310 = vmatmul.mubr.f32.gmra.mrb[0].mxu0 %v309
  %v311 = vpop.f32.mrb[0].mxu0
  %v312 = vadd.f32 0.0, %v311
  %v313 = vpop.f32.mrb[0].mxu0
  %314 = vdwg.mxu0
  %315 = vmatprep.subr.mxu0 0.0
  %v316 = vand.u32 %v220, 4294901760
  %v317 = vsub.f32 %v220, %v316
  %v318 = vand.u32 %v317, 4294901760
  %v319 = vsub.f32 %v317, %v318
  %v320 = vand.u32 %v319, 4294901760
  %321 = vmatpush1.msra.mxu0 %v320
  %322 = vmatprep.subr.mxu0 0.0
  %v323 = vand.u32 %v221, 4294901760
  %v324 = vsub.f32 %v221, %v323
  %v325 = vand.u32 %v324, 4294901760
  %v326 = vsub.f32 %v324, %v325
  %v327 = vand.u32 %v326, 4294901760
  %328 = vmatpush1.msra.mxu0 %v327
  %329 = vmatprep.subr.mxu0 0.0
  %v330 = vand.u32 %v222, 4294901760
  %v331 = vsub.f32 %v222, %v330
  %v332 = vand.u32 %v331, 4294901760
  %v333 = vsub.f32 %v331, %v332
  %v334 = vand.u32 %v333, 4294901760
  %335 = vmatpush1.msra.mxu0 %v334
  %336 = vmatprep.subr.mxu0 0.0
  %v337 = vand.u32 %v223, 4294901760
  %v338 = vsub.f32 %v223, %v337
  %v339 = vand.u32 %v338, 4294901760
  %v340 = vsub.f32 %v338, %v339
  %v341 = vand.u32 %v340, 4294901760
  %342 = vmatpush1.msra.mxu0 %v341
  %343 = vmatprep.subr.mxu0 0.0
  %v344 = vand.u32 %v224, 4294901760
  %v345 = vsub.f32 %v224, %v344
  %v346 = vand.u32 %v345, 4294901760
  %v347 = vsub.f32 %v345, %v346
  %v348 = vand.u32 %v347, 4294901760
  %349 = vmatpush1.msra.mxu0 %v348
  %350 = vmatprep.subr.mxu0 0.0
  %v351 = vand.u32 %v225, 4294901760
  %v352 = vsub.f32 %v225, %v351
  %v353 = vand.u32 %v352, 4294901760
  %v354 = vsub.f32 %v352, %v353
  %v355 = vand.u32 %v354, 4294901760
  %356 = vmatpush1.msra.mxu0 %v355
  %357 = vmatprep.subr.mxu0 0.0
  %v358 = vand.u32 %v226, 4294901760
  %v359 = vsub.f32 %v226, %v358
  %v360 = vand.u32 %v359, 4294901760
  %v361 = vsub.f32 %v359, %v360
  %v362 = vand.u32 %v361, 4294901760
  %363 = vmatpush1.msra.mxu0 %v362
  %364 = vmatprep.subr.mxu0 0.0
  %v365 = vand.u32 %v227, 4294901760
  %v366 = vsub.f32 %v227, %v365
  %v367 = vand.u32 %v366, 4294901760
  %v368 = vsub.f32 %v366, %v367
  %v369 = vand.u32 %v368, 4294901760
  %370 = vmatpush1.msra.mxu0 %v369
  %371 = vmatprep.subr.mxu0 0.0
  %372 = vmatpush1.msra.mxu0 0.0
  %373 = vmatprep.subr.mxu0 0.0
  %374 = vmatpush1.msra.mxu0 0.0
  %375 = vmatprep.subr.mxu0 0.0
  %376 = vmatpush1.msra.mxu0 0.0
  %377 = vmatprep.subr.mxu0 0.0
  %378 = vmatpush1.msra.mxu0 0.0
  %379 = vmatprep.subr.mxu0 0.0
  %380 = vmatpush1.msra.mxu0 0.0
  %381 = vmatprep.subr.mxu0 0.0
  %382 = vmatpush1.msra.mxu0 0.0
  %383 = vmatprep.subr.mxu0 0.0
  %384 = vmatpush1.msra.mxu0 0.0
  %385 = vmatprep.subr.mxu0 0.0
  %386 = vmatpush1.msra.mxu0 0.0
  %387 = vmatprep.subr.mxu0 0.0
  %388 = vmatpush1.msra.mxu0 0.0
  %389 = vmatprep.subr.mxu0 0.0
  %390 = vmatpush1.msra.mxu0 0.0
  %391 = vmatprep.subr.mxu0 0.0
  %392 = vmatpush1.msra.mxu0 0.0
  %393 = vmatprep.subr.mxu0 0.0
  %394 = vmatpush1.msra.mxu0 0.0
  %395 = vmatprep.subr.mxu0 0.0
  %396 = vmatpush1.msra.mxu0 0.0
  %397 = vmatprep.subr.mxu0 0.0
  %398 = vmatpush1.msra.mxu0 0.0
  %399 = vmatprep.subr.mxu0 0.0
  %400 = vmatpush1.msra.mxu0 0.0
  %401 = vmatprep.subr.mxu0 0.0
  %402 = vmatpush1.msra.mxu0 0.0
  %403 = vmatprep.subr.mxu0 0.0
  %404 = vmatpush1.msra.mxu0 0.0
  %405 = vmatprep.subr.mxu0 0.0
  %406 = vmatpush1.msra.mxu0 0.0
  %407 = vmatprep.subr.mxu0 0.0
  %408 = vmatpush1.msra.mxu0 0.0
  %409 = vmatprep.subr.mxu0 0.0
  %410 = vmatpush1.msra.mxu0 0.0
  %411 = vmatprep.subr.mxu0 0.0
  %412 = vmatpush1.msra.mxu0 0.0
  %413 = vmatprep.subr.mxu0 0.0
  %414 = vmatpush1.msra.mxu0 0.0
  %415 = vmatprep.subr.mxu0 0.0
  %416 = vmatpush1.msra.mxu0 0.0
  %417 = vmatprep.subr.mxu0 0.0
  %418 = vmatpush1.msra.mxu0 0.0
  %419 = vmatprep.mubr.f32.mxu0 0.0
  %v420 = vand.u32 %v230, 4294901760
  %421 = vmatmul.mubr.f32.gmra.mrb[0].mxu0 %v420
  %v422 = vpop.f32.mrb[0].mxu0
  %v423 = vadd.f32 %v312, %v422
  %v424 = vpop.f32.mrb[0].mxu0
  %425 = vdwg.mxu0
  %426 = vmatprep.subr.mxu0 0.0
  %v427 = vand.u32 %v220, 4294901760
  %v428 = vsub.f32 %v220, %v427
  %429 = vmatpush1.msra.mxu0 %v428
  %430 = vmatprep.subr.mxu0 0.0
  %v431 = vand.u32 %v221, 4294901760
  %v432 = vsub.f32 %v221, %v431
  %433 = vmatpush1.msra.mxu0 %v432
  %434 = vmatprep.subr.mxu0 0.0
  %v435 = vand.u32 %v222, 4294901760
  %v436 = vsub.f32 %v222, %v435
  %437 = vmatpush1.msra.mxu0 %v436
  %438 = vmatprep.subr.mxu0 0.0
  %v439 = vand.u32 %v223, 4294901760
  %v440 = vsub.f32 %v223, %v439
  %441 = vmatpush1.msra.mxu0 %v440
  %442 = vmatprep.subr.mxu0 0.0
  %v443 = vand.u32 %v224, 4294901760
  %v444 = vsub.f32 %v224, %v443
  %445 = vmatpush1.msra.mxu0 %v444
  %446 = vmatprep.subr.mxu0 0.0
  %v447 = vand.u32 %v225, 4294901760
  %v448 = vsub.f32 %v225, %v447
  %449 = vmatpush1.msra.mxu0 %v448
  %450 = vmatprep.subr.mxu0 0.0
  %v451 = vand.u32 %v226, 4294901760
  %v452 = vsub.f32 %v226, %v451
  %453 = vmatpush1.msra.mxu0 %v452
  %454 = vmatprep.subr.mxu0 0.0
  %v455 = vand.u32 %v227, 4294901760
  %v456 = vsub.f32 %v227, %v455
  %457 = vmatpush1.msra.mxu0 %v456
  %458 = vmatprep.subr.mxu0 0.0
  %459 = vmatpush1.msra.mxu0 0.0
  %460 = vmatprep.subr.mxu0 0.0
  %461 = vmatpush1.msra.mxu0 0.0
  %462 = vmatprep.subr.mxu0 0.0
  %463 = vmatpush1.msra.mxu0 0.0
  %464 = vmatprep.subr.mxu0 0.0
  %465 = vmatpush1.msra.mxu0 0.0
  %466 = vmatprep.subr.mxu0 0.0
  %467 = vmatpush1.msra.mxu0 0.0
  %468 = vmatprep.subr.mxu0 0.0
  %469 = vmatpush1.msra.mxu0 0.0
  %470 = vmatprep.subr.mxu0 0.0
  %471 = vmatpush1.msra.mxu0 0.0
  %472 = vmatprep.subr.mxu0 0.0
  %473 = vmatpush1.msra.mxu0 0.0
  %474 = vmatprep.subr.mxu0 0.0
  %475 = vmatpush1.msra.mxu0 0.0
  %476 = vmatprep.subr.mxu0 0.0
  %477 = vmatpush1.msra.mxu0 0.0
  %478 = vmatprep.subr.mxu0 0.0
  %479 = vmatpush1.msra.mxu0 0.0
  %480 = vmatprep.subr.mxu0 0.0
  %481 = vmatpush1.msra.mxu0 0.0
  %482 = vmatprep.subr.mxu0 0.0
  %483 = vmatpush1.msra.mxu0 0.0
  %484 = vmatprep.subr.mxu0 0.0
  %485 = vmatpush1.msra.mxu0 0.0
  %486 = vmatprep.subr.mxu0 0.0
  %487 = vmatpush1.msra.mxu0 0.0
  %488 = vmatprep.subr.mxu0 0.0
  %489 = vmatpush1.msra.mxu0 0.0
  %490 = vmatprep.subr.mxu0 0.0
  %491 = vmatpush1.msra.mxu0 0.0
  %492 = vmatprep.subr.mxu0 0.0
  %493 = vmatpush1.msra.mxu0 0.0
  %494 = vmatprep.subr.mxu0 0.0
  %495 = vmatpush1.msra.mxu0 0.0
  %496 = vmatprep.subr.mxu0 0.0
  %497 = vmatpush1.msra.mxu0 0.0
  %498 = vmatprep.subr.mxu0 0.0
  %499 = vmatpush1.msra.mxu0 0.0
  %500 = vmatprep.subr.mxu0 0.0
  %501 = vmatpush1.msra.mxu0 0.0
  %502 = vmatprep.subr.mxu0 0.0
  %503 = vmatpush1.msra.mxu0 0.0
  %504 = vmatprep.subr.mxu0 0.0
  %505 = vmatpush1.msra.mxu0 0.0
  %506 = vmatprep.mubr.f32.mxu0 0.0
  %v507 = vand.u32 %v230, 4294901760
  %v508 = vsub.f32 %v230, %v507
  %509 = vmatmul.mubr.f32.gmra.mrb[0].mxu0 %v508
  %v510 = vpop.f32.mrb[0].mxu0
  %v511 = vadd.f32 %v423, %v510
  %v512 = vpop.f32.mrb[0].mxu0
  %513 = vdwg.mxu0
  %514 = vmatprep.subr.mxu0 0.0
  %v515 = vand.u32 %v220, 4294901760
  %516 = vmatpush1.msra.mxu0 %v515
  %517 = vmatprep.subr.mxu0 0.0
  %v518 = vand.u32 %v221, 4294901760
  %519 = vmatpush1.msra.mxu0 %v518
  %520 = vmatprep.subr.mxu0 0.0
  %v521 = vand.u32 %v222, 4294901760
  %522 = vmatpush1.msra.mxu0 %v521
  %523 = vmatprep.subr.mxu0 0.0
  %v524 = vand.u32 %v223, 4294901760
  %525 = vmatpush1.msra.mxu0 %v524
  %526 = vmatprep.subr.mxu0 0.0
  %v527 = vand.u32 %v224, 4294901760
  %528 = vmatpush1.msra.mxu0 %v527
  %529 = vmatprep.subr.mxu0 0.0
  %v530 = vand.u32 %v225, 4294901760
  %531 = vmatpush1.msra.mxu0 %v530
  %532 = vmatprep.subr.mxu0 0.0
  %v533 = vand.u32 %v226, 4294901760
  %534 = vmatpush1.msra.mxu0 %v533
  %535 = vmatprep.subr.mxu0 0.0
  %v536 = vand.u32 %v227, 4294901760
  %537 = vmatpush1.msra.mxu0 %v536
  %538 = vmatprep.subr.mxu0 0.0
  %539 = vmatpush1.msra.mxu0 0.0
  %540 = vmatprep.subr.mxu0 0.0
  %541 = vmatpush1.msra.mxu0 0.0
  %542 = vmatprep.subr.mxu0 0.0
  %543 = vmatpush1.msra.mxu0 0.0
  %544 = vmatprep.subr.mxu0 0.0
  %545 = vmatpush1.msra.mxu0 0.0
  %546 = vmatprep.subr.mxu0 0.0
  %547 = vmatpush1.msra.mxu0 0.0
  %548 = vmatprep.subr.mxu0 0.0
  %549 = vmatpush1.msra.mxu0 0.0
  %550 = vmatprep.subr.mxu0 0.0
  %551 = vmatpush1.msra.mxu0 0.0
  %552 = vmatprep.subr.mxu0 0.0
  %553 = vmatpush1.msra.mxu0 0.0
  %554 = vmatprep.subr.mxu0 0.0
  %555 = vmatpush1.msra.mxu0 0.0
  %556 = vmatprep.subr.mxu0 0.0
  %557 = vmatpush1.msra.mxu0 0.0
  %558 = vmatprep.subr.mxu0 0.0
  %559 = vmatpush1.msra.mxu0 0.0
  %560 = vmatprep.subr.mxu0 0.0
  %561 = vmatpush1.msra.mxu0 0.0
  %562 = vmatprep.subr.mxu0 0.0
  %563 = vmatpush1.msra.mxu0 0.0
  %564 = vmatprep.subr.mxu0 0.0
  %565 = vmatpush1.msra.mxu0 0.0
  %566 = vmatprep.subr.mxu0 0.0
  %567 = vmatpush1.msra.mxu0 0.0
  %568 = vmatprep.subr.mxu0 0.0
  %569 = vmatpush1.msra.mxu0 0.0
  %570 = vmatprep.subr.mxu0 0.0
  %571 = vmatpush1.msra.mxu0 0.0
  %572 = vmatprep.subr.mxu0 0.0
  %573 = vmatpush1.msra.mxu0 0.0
  %574 = vmatprep.subr.mxu0 0.0
  %575 = vmatpush1.msra.mxu0 0.0
  %576 = vmatprep.subr.mxu0 0.0
  %577 = vmatpush1.msra.mxu0 0.0
  %578 = vmatprep.subr.mxu0 0.0
  %579 = vmatpush1.msra.mxu0 0.0
  %580 = vmatprep.subr.mxu0 0.0
  %581 = vmatpush1.msra.mxu0 0.0
  %582 = vmatprep.subr.mxu0 0.0
  %583 = vmatpush1.msra.mxu0 0.0
  %584 = vmatprep.subr.mxu0 0.0
  %585 = vmatpush1.msra.mxu0 0.0
  %586 = vmatprep.mubr.f32.mxu0 0.0
  %v587 = vand.u32 %v230, 4294901760
  %v588 = vsub.f32 %v230, %v587
  %v589 = vand.u32 %v588, 4294901760
  %590 = vmatmul.mubr.f32.gmra.mrb[0].mxu0 %v589
  %v591 = vpop.f32.mrb[0].mxu0
  %v592 = vadd.f32 %v511, %v591
  %v593 = vpop.f32.mrb[0].mxu0
  %594 = vdwg.mxu0
  %595 = vmatprep.subr.mxu0 0.0
  %v596 = vand.u32 %v220, 4294901760
  %v597 = vsub.f32 %v220, %v596
  %v598 = vand.u32 %v597, 4294901760
  %599 = vmatpush1.msra.mxu0 %v598
  %600 = vmatprep.subr.mxu0 0.0
  %v601 = vand.u32 %v221, 4294901760
  %v602 = vsub.f32 %v221, %v601
  %v603 = vand.u32 %v602, 4294901760
  %604 = vmatpush1.msra.mxu0 %v603
  %605 = vmatprep.subr.mxu0 0.0
  %v606 = vand.u32 %v222, 4294901760
  %v607 = vsub.f32 %v222, %v606
  %v608 = vand.u32 %v607, 4294901760
  %609 = vmatpush1.msra.mxu0 %v608
  %610 = vmatprep.subr.mxu0 0.0
  %v611 = vand.u32 %v223, 4294901760
  %v612 = vsub.f32 %v223, %v611
  %v613 = vand.u32 %v612, 4294901760
  %614 = vmatpush1.msra.mxu0 %v613
  %615 = vmatprep.subr.mxu0 0.0
  %v616 = vand.u32 %v224, 4294901760
  %v617 = vsub.f32 %v224, %v616
  %v618 = vand.u32 %v617, 4294901760
  %619 = vmatpush1.msra.mxu0 %v618
  %620 = vmatprep.subr.mxu0 0.0
  %v621 = vand.u32 %v225, 4294901760
  %v622 = vsub.f32 %v225, %v621
  %v623 = vand.u32 %v622, 4294901760
  %624 = vmatpush1.msra.mxu0 %v623
  %625 = vmatprep.subr.mxu0 0.0
  %v626 = vand.u32 %v226, 4294901760
  %v627 = vsub.f32 %v226, %v626
  %v628 = vand.u32 %v627, 4294901760
  %629 = vmatpush1.msra.mxu0 %v628
  %630 = vmatprep.subr.mxu0 0.0
  %v631 = vand.u32 %v227, 4294901760
  %v632 = vsub.f32 %v227, %v631
  %v633 = vand.u32 %v632, 4294901760
  %634 = vmatpush1.msra.mxu0 %v633
  %635 = vmatprep.subr.mxu0 0.0
  %636 = vmatpush1.msra.mxu0 0.0
  %637 = vmatprep.subr.mxu0 0.0
  %638 = vmatpush1.msra.mxu0 0.0
  %639 = vmatprep.subr.mxu0 0.0
  %640 = vmatpush1.msra.mxu0 0.0
  %641 = vmatprep.subr.mxu0 0.0
  %642 = vmatpush1.msra.mxu0 0.0
  %643 = vmatprep.subr.mxu0 0.0
  %644 = vmatpush1.msra.mxu0 0.0
  %645 = vmatprep.subr.mxu0 0.0
  %646 = vmatpush1.msra.mxu0 0.0
  %647 = vmatprep.subr.mxu0 0.0
  %648 = vmatpush1.msra.mxu0 0.0
  %649 = vmatprep.subr.mxu0 0.0
  %650 = vmatpush1.msra.mxu0 0.0
  %651 = vmatprep.subr.mxu0 0.0
  %652 = vmatpush1.msra.mxu0 0.0
  %653 = vmatprep.subr.mxu0 0.0
  %654 = vmatpush1.msra.mxu0 0.0
  %655 = vmatprep.subr.mxu0 0.0
  %656 = vmatpush1.msra.mxu0 0.0
  %657 = vmatprep.subr.mxu0 0.0
  %658 = vmatpush1.msra.mxu0 0.0
  %659 = vmatprep.subr.mxu0 0.0
  %660 = vmatpush1.msra.mxu0 0.0
  %661 = vmatprep.subr.mxu0 0.0
  %662 = vmatpush1.msra.mxu0 0.0
  %663 = vmatprep.subr.mxu0 0.0
  %664 = vmatpush1.msra.mxu0 0.0
  %665 = vmatprep.subr.mxu0 0.0
  %666 = vmatpush1.msra.mxu0 0.0
  %667 = vmatprep.subr.mxu0 0.0
  %668 = vmatpush1.msra.mxu0 0.0
  %669 = vmatprep.subr.mxu0 0.0
  %670 = vmatpush1.msra.mxu0 0.0
  %671 = vmatprep.subr.mxu0 0.0
  %672 = vmatpush1.msra.mxu0 0.0
  %673 = vmatprep.subr.mxu0 0.0
  %674 = vmatpush1.msra.mxu0 0.0
  %675 = vmatprep.subr.mxu0 0.0
  %676 = vmatpush1.msra.mxu0 0.0
  %677 = vmatprep.subr.mxu0 0.0
  %678 = vmatpush1.msra.mxu0 0.0
  %679 = vmatprep.subr.mxu0 0.0
  %680 = vmatpush1.msra.mxu0 0.0
  %681 = vmatprep.subr.mxu0 0.0
  %682 = vmatpush1.msra.mxu0 0.0
  %683 = vmatprep.mubr.f32.mxu0 0.0
  %v684 = vand.u32 %v230, 4294901760
  %685 = vmatmul.mubr.f32.gmra.mrb[0].mxu0 %v684
  %v686 = vpop.f32.mrb[0].mxu0
  %v687 = vadd.f32 %v592, %v686
  %v688 = vpop.f32.mrb[0].mxu0
  %689 = vdwg.mxu0
  %690 = vmatprep.subr.mxu0 0.0
  %v691 = vand.u32 %v220, 4294901760
  %692 = vmatpush1.msra.mxu0 %v691
  %693 = vmatprep.subr.mxu0 0.0
  %v694 = vand.u32 %v221, 4294901760
  %695 = vmatpush1.msra.mxu0 %v694
  %696 = vmatprep.subr.mxu0 0.0
  %v697 = vand.u32 %v222, 4294901760
  %698 = vmatpush1.msra.mxu0 %v697
  %699 = vmatprep.subr.mxu0 0.0
  %v700 = vand.u32 %v223, 4294901760
  %701 = vmatpush1.msra.mxu0 %v700
  %702 = vmatprep.subr.mxu0 0.0
  %v703 = vand.u32 %v224, 4294901760
  %704 = vmatpush1.msra.mxu0 %v703
  %705 = vmatprep.subr.mxu0 0.0
  %v706 = vand.u32 %v225, 4294901760
  %707 = vmatpush1.msra.mxu0 %v706
  %708 = vmatprep.subr.mxu0 0.0
  %v709 = vand.u32 %v226, 4294901760
  %710 = vmatpush1.msra.mxu0 %v709
  %711 = vmatprep.subr.mxu0 0.0
  %v712 = vand.u32 %v227, 4294901760
  %713 = vmatpush1.msra.mxu0 %v712
  %714 = vmatprep.subr.mxu0 0.0
  %715 = vmatpush1.msra.mxu0 0.0
  %716 = vmatprep.subr.mxu0 0.0
  %717 = vmatpush1.msra.mxu0 0.0
  %718 = vmatprep.subr.mxu0 0.0
  %719 = vmatpush1.msra.mxu0 0.0
  %720 = vmatprep.subr.mxu0 0.0
  %721 = vmatpush1.msra.mxu0 0.0
  %722 = vmatprep.subr.mxu0 0.0
  %723 = vmatpush1.msra.mxu0 0.0
  %724 = vmatprep.subr.mxu0 0.0
  %725 = vmatpush1.msra.mxu0 0.0
  %726 = vmatprep.subr.mxu0 0.0
  %727 = vmatpush1.msra.mxu0 0.0
  %728 = vmatprep.subr.mxu0 0.0
  %729 = vmatpush1.msra.mxu0 0.0
  %730 = vmatprep.subr.mxu0 0.0
  %731 = vmatpush1.msra.mxu0 0.0
  %732 = vmatprep.subr.mxu0 0.0
  %733 = vmatpush1.msra.mxu0 0.0
  %734 = vmatprep.subr.mxu0 0.0
  %735 = vmatpush1.msra.mxu0 0.0
  %736 = vmatprep.subr.mxu0 0.0
  %737 = vmatpush1.msra.mxu0 0.0
  %738 = vmatprep.subr.mxu0 0.0
  %739 = vmatpush1.msra.mxu0 0.0
  %740 = vmatprep.subr.mxu0 0.0
  %741 = vmatpush1.msra.mxu0 0.0
  %742 = vmatprep.subr.mxu0 0.0
  %743 = vmatpush1.msra.mxu0 0.0
  %744 = vmatprep.subr.mxu0 0.0
  %745 = vmatpush1.msra.mxu0 0.0
  %746 = vmatprep.subr.mxu0 0.0
  %747 = vmatpush1.msra.mxu0 0.0
  %748 = vmatprep.subr.mxu0 0.0
  %749 = vmatpush1.msra.mxu0 0.0
  %750 = vmatprep.subr.mxu0 0.0
  %751 = vmatpush1.msra.mxu0 0.0
  %752 = vmatprep.subr.mxu0 0.0
  %753 = vmatpush1.msra.mxu0 0.0
  %754 = vmatprep.subr.mxu0 0.0
  %755 = vmatpush1.msra.mxu0 0.0
  %756 = vmatprep.subr.mxu0 0.0
  %757 = vmatpush1.msra.mxu0 0.0
  %758 = vmatprep.subr.mxu0 0.0
  %759 = vmatpush1.msra.mxu0 0.0
  %760 = vmatprep.subr.mxu0 0.0
  %761 = vmatpush1.msra.mxu0 0.0
  %762 = vmatprep.mubr.f32.mxu0 0.0
  %v763 = vand.u32 %v230, 4294901760
  %764 = vmatmul.mubr.f32.gmra.mrb[0].mxu0 %v763
  %v765 = vpop.f32.mrb[0].mxu0
  %v766 = vadd.f32 %v687, %v765
  %v767 = vpop.f32.mrb[0].mxu0
  %768 = vdwg.mxu0
  %v770 = vsel %vm228, %v194, 0
  %772 = vmatprep.subr.mxu0 0.0
  %v773 = vand.u32 %v195, 4294901760
  %774 = vmatpush1.msra.mxu0 %v773
  %775 = vmatprep.subr.mxu0 0.0
  %v776 = vand.u32 %v196, 4294901760
  %777 = vmatpush1.msra.mxu0 %v776
  %778 = vmatprep.subr.mxu0 0.0
  %v779 = vand.u32 %v197, 4294901760
  %780 = vmatpush1.msra.mxu0 %v779
  %781 = vmatprep.subr.mxu0 0.0
  %v782 = vand.u32 %v198, 4294901760
  %783 = vmatpush1.msra.mxu0 %v782
  %784 = vmatprep.subr.mxu0 0.0
  %v785 = vand.u32 %v199, 4294901760
  %786 = vmatpush1.msra.mxu0 %v785
  %787 = vmatprep.subr.mxu0 0.0
  %v788 = vand.u32 %v200, 4294901760
  %789 = vmatpush1.msra.mxu0 %v788
  %790 = vmatprep.subr.mxu0 0.0
  %v791 = vand.u32 %v201, 4294901760
  %792 = vmatpush1.msra.mxu0 %v791
  %793 = vmatprep.subr.mxu0 0.0
  %v794 = vand.u32 %v202, 4294901760
  %795 = vmatpush1.msra.mxu0 %v794
  %796 = vmatprep.subr.mxu0 0.0
  %v797 = vand.u32 %v203, 4294901760
  %798 = vmatpush1.msra.mxu0 %v797
  %799 = vmatprep.subr.mxu0 0.0
  %v800 = vand.u32 %v204, 4294901760
  %801 = vmatpush1.msra.mxu0 %v800
  %802 = vmatprep.subr.mxu0 0.0
  %v803 = vand.u32 %v205, 4294901760
  %804 = vmatpush1.msra.mxu0 %v803
  %805 = vmatprep.subr.mxu0 0.0
  %v806 = vand.u32 %v206, 4294901760
  %807 = vmatpush1.msra.mxu0 %v806
  %808 = vmatprep.subr.mxu0 0.0
  %v809 = vand.u32 %v207, 4294901760
  %810 = vmatpush1.msra.mxu0 %v809
  %811 = vmatprep.subr.mxu0 0.0
  %v812 = vand.u32 %v208, 4294901760
  %813 = vmatpush1.msra.mxu0 %v812
  %814 = vmatprep.subr.mxu0 0.0
  %v815 = vand.u32 %v209, 4294901760
  %816 = vmatpush1.msra.mxu0 %v815
  %817 = vmatprep.subr.mxu0 0.0
  %v818 = vand.u32 %v210, 4294901760
  %819 = vmatpush1.msra.mxu0 %v818
  %820 = vmatprep.subr.mxu0 0.0
  %v821 = vand.u32 %v211, 4294901760
  %822 = vmatpush1.msra.mxu0 %v821
  %823 = vmatprep.subr.mxu0 0.0
  %v824 = vand.u32 %v212, 4294901760
  %825 = vmatpush1.msra.mxu0 %v824
  %826 = vmatprep.subr.mxu0 0.0
  %v827 = vand.u32 %v213, 4294901760
  %828 = vmatpush1.msra.mxu0 %v827
  %829 = vmatprep.subr.mxu0 0.0
  %v830 = vand.u32 %v214, 4294901760
  %831 = vmatpush1.msra.mxu0 %v830
  %832 = vmatprep.subr.mxu0 0.0
  %v833 = vand.u32 %v215, 4294901760
  %834 = vmatpush1.msra.mxu0 %v833
  %835 = vmatprep.subr.mxu0 0.0
  %v836 = vand.u32 %v216, 4294901760
  %837 = vmatpush1.msra.mxu0 %v836
  %838 = vmatprep.subr.mxu0 0.0
  %v839 = vand.u32 %v217, 4294901760
  %840 = vmatpush1.msra.mxu0 %v839
  %841 = vmatprep.subr.mxu0 0.0
  %v842 = vand.u32 %v218, 4294901760
  %843 = vmatpush1.msra.mxu0 %v842
  %844 = vmatprep.subr.mxu0 0.0
  %845 = vmatpush1.msra.mxu0 0.0
  %846 = vmatprep.subr.mxu0 0.0
  %847 = vmatpush1.msra.mxu0 0.0
  %848 = vmatprep.subr.mxu0 0.0
  %849 = vmatpush1.msra.mxu0 0.0
  %850 = vmatprep.subr.mxu0 0.0
  %851 = vmatpush1.msra.mxu0 0.0
  %852 = vmatprep.subr.mxu0 0.0
  %853 = vmatpush1.msra.mxu0 0.0
  %854 = vmatprep.subr.mxu0 0.0
  %855 = vmatpush1.msra.mxu0 0.0
  %856 = vmatprep.subr.mxu0 0.0
  %857 = vmatpush1.msra.mxu0 0.0
  %858 = vmatprep.subr.mxu0 0.0
  %859 = vmatpush1.msra.mxu0 0.0
  %v860 = vand.u32 %v770, 4294901760
  %v861 = vsub.f32 %v770, %v860
  %v862 = vand.u32 %v861, 4294901760
  %v863 = vsub.f32 %v861, %v862
  %v864 = vand.u32 %v863, 4294901760
  %865 = vmatprep.mubr.f32.mxu0 %v864
  %v866 = vand.u32 %v193, 4294901760
  %v867 = vsub.f32 %v193, %v866
  %v868 = vand.u32 %v867, 4294901760
  %v869 = vsub.f32 %v867, %v868
  %v870 = vand.u32 %v869, 4294901760
  %871 = vmatmul.mubr.f32.gmra.mrb[0].mxu0 %v870
  %v872 = vpop.f32.mrb[0].mxu0
  %v873 = vadd.f32 %v766, %v872
  %v874 = vpop.f32.mrb[0].mxu0
  %875 = vdwg.mxu0
  %876 = vmatprep.subr.mxu0 0.0
  %v877 = vand.u32 %v195, 4294901760
  %v878 = vsub.f32 %v195, %v877
  %v879 = vand.u32 %v878, 4294901760
  %v880 = vsub.f32 %v878, %v879
  %v881 = vand.u32 %v880, 4294901760
  %882 = vmatpush1.msra.mxu0 %v881
  %883 = vmatprep.subr.mxu0 0.0
  %v884 = vand.u32 %v196, 4294901760
  %v885 = vsub.f32 %v196, %v884
  %v886 = vand.u32 %v885, 4294901760
  %v887 = vsub.f32 %v885, %v886
  %v888 = vand.u32 %v887, 4294901760
  %889 = vmatpush1.msra.mxu0 %v888
  %890 = vmatprep.subr.mxu0 0.0
  %v891 = vand.u32 %v197, 4294901760
  %v892 = vsub.f32 %v197, %v891
  %v893 = vand.u32 %v892, 4294901760
  %v894 = vsub.f32 %v892, %v893
  %v895 = vand.u32 %v894, 4294901760
  %896 = vmatpush1.msra.mxu0 %v895
  %897 = vmatprep.subr.mxu0 0.0
  %v898 = vand.u32 %v198, 4294901760
  %v899 = vsub.f32 %v198, %v898
  %v900 = vand.u32 %v899, 4294901760
  %v901 = vsub.f32 %v899, %v900
  %v902 = vand.u32 %v901, 4294901760
  %903 = vmatpush1.msra.mxu0 %v902
  %904 = vmatprep.subr.mxu0 0.0
  %v905 = vand.u32 %v199, 4294901760
  %v906 = vsub.f32 %v199, %v905
  %v907 = vand.u32 %v906, 4294901760
  %v908 = vsub.f32 %v906, %v907
  %v909 = vand.u32 %v908, 4294901760
  %910 = vmatpush1.msra.mxu0 %v909
  %911 = vmatprep.subr.mxu0 0.0
  %v912 = vand.u32 %v200, 4294901760
  %v913 = vsub.f32 %v200, %v912
  %v914 = vand.u32 %v913, 4294901760
  %v915 = vsub.f32 %v913, %v914
  %v916 = vand.u32 %v915, 4294901760
  %917 = vmatpush1.msra.mxu0 %v916
  %918 = vmatprep.subr.mxu0 0.0
  %v919 = vand.u32 %v201, 4294901760
  %v920 = vsub.f32 %v201, %v919
  %v921 = vand.u32 %v920, 4294901760
  %v922 = vsub.f32 %v920, %v921
  %v923 = vand.u32 %v922, 4294901760
  %924 = vmatpush1.msra.mxu0 %v923
  %925 = vmatprep.subr.mxu0 0.0
  %v926 = vand.u32 %v202, 4294901760
  %v927 = vsub.f32 %v202, %v926
  %v928 = vand.u32 %v927, 4294901760
  %v929 = vsub.f32 %v927, %v928
  %v930 = vand.u32 %v929, 4294901760
  %931 = vmatpush1.msra.mxu0 %v930
  %932 = vmatprep.subr.mxu0 0.0
  %v933 = vand.u32 %v203, 4294901760
  %v934 = vsub.f32 %v203, %v933
  %v935 = vand.u32 %v934, 4294901760
  %v936 = vsub.f32 %v934, %v935
  %v937 = vand.u32 %v936, 4294901760
  %938 = vmatpush1.msra.mxu0 %v937
  %939 = vmatprep.subr.mxu0 0.0
  %v940 = vand.u32 %v204, 4294901760
  %v941 = vsub.f32 %v204, %v940
  %v942 = vand.u32 %v941, 4294901760
  %v943 = vsub.f32 %v941, %v942
  %v944 = vand.u32 %v943, 4294901760
  %945 = vmatpush1.msra.mxu0 %v944
  %946 = vmatprep.subr.mxu0 0.0
  %v947 = vand.u32 %v205, 4294901760
  %v948 = vsub.f32 %v205, %v947
  %v949 = vand.u32 %v948, 4294901760
  %v950 = vsub.f32 %v948, %v949
  %v951 = vand.u32 %v950, 4294901760
  %952 = vmatpush1.msra.mxu0 %v951
  %953 = vmatprep.subr.mxu0 0.0
  %v954 = vand.u32 %v206, 4294901760
  %v955 = vsub.f32 %v206, %v954
  %v956 = vand.u32 %v955, 4294901760
  %v957 = vsub.f32 %v955, %v956
  %v958 = vand.u32 %v957, 4294901760
  %959 = vmatpush1.msra.mxu0 %v958
  %960 = vmatprep.subr.mxu0 0.0
  %v961 = vand.u32 %v207, 4294901760
  %v962 = vsub.f32 %v207, %v961
  %v963 = vand.u32 %v962, 4294901760
  %v964 = vsub.f32 %v962, %v963
  %v965 = vand.u32 %v964, 4294901760
  %966 = vmatpush1.msra.mxu0 %v965
  %967 = vmatprep.subr.mxu0 0.0
  %v968 = vand.u32 %v208, 4294901760
  %v969 = vsub.f32 %v208, %v968
  %v970 = vand.u32 %v969, 4294901760
  %v971 = vsub.f32 %v969, %v970
  %v972 = vand.u32 %v971, 4294901760
  %973 = vmatpush1.msra.mxu0 %v972
  %974 = vmatprep.subr.mxu0 0.0
  %v975 = vand.u32 %v209, 4294901760
  %v976 = vsub.f32 %v209, %v975
  %v977 = vand.u32 %v976, 4294901760
  %v978 = vsub.f32 %v976, %v977
  %v979 = vand.u32 %v978, 4294901760
  %980 = vmatpush1.msra.mxu0 %v979
  %981 = vmatprep.subr.mxu0 0.0
  %v982 = vand.u32 %v210, 4294901760
  %v983 = vsub.f32 %v210, %v982
  %v984 = vand.u32 %v983, 4294901760
  %v985 = vsub.f32 %v983, %v984
  %v986 = vand.u32 %v985, 4294901760
  %987 = vmatpush1.msra.mxu0 %v986
  %988 = vmatprep.subr.mxu0 0.0
  %v989 = vand.u32 %v211, 4294901760
  %v990 = vsub.f32 %v211, %v989
  %v991 = vand.u32 %v990, 4294901760
  %v992 = vsub.f32 %v990, %v991
  %v993 = vand.u32 %v992, 4294901760
  %994 = vmatpush1.msra.mxu0 %v993
  %995 = vmatprep.subr.mxu0 0.0
  %v996 = vand.u32 %v212, 4294901760
  %v997 = vsub.f32 %v212, %v996
  %v998 = vand.u32 %v997, 4294901760
  %v999 = vsub.f32 %v997, %v998
  %v1000 = vand.u32 %v999, 4294901760
  %1001 = vmatpush1.msra.mxu0 %v1000
  %1002 = vmatprep.subr.mxu0 0.0
  %v1003 = vand.u32 %v213, 4294901760
  %v1004 = vsub.f32 %v213, %v1003
  %v1005 = vand.u32 %v1004, 4294901760
  %v1006 = vsub.f32 %v1004, %v1005
  %v1007 = vand.u32 %v1006, 4294901760
  %1008 = vmatpush1.msra.mxu0 %v1007
  %1009 = vmatprep.subr.mxu0 0.0
  %v1010 = vand.u32 %v214, 4294901760
  %v1011 = vsub.f32 %v214, %v1010
  %v1012 = vand.u32 %v1011, 4294901760
  %v1013 = vsub.f32 %v1011, %v1012
  %v1014 = vand.u32 %v1013, 4294901760
  %1015 = vmatpush1.msra.mxu0 %v1014
  %1016 = vmatprep.subr.mxu0 0.0
  %v1017 = vand.u32 %v215, 4294901760
  %v1018 = vsub.f32 %v215, %v1017
  %v1019 = vand.u32 %v1018, 4294901760
  %v1020 = vsub.f32 %v1018, %v1019
  %v1021 = vand.u32 %v1020, 4294901760
  %1022 = vmatpush1.msra.mxu0 %v1021
  %1023 = vmatprep.subr.mxu0 0.0
  %v1024 = vand.u32 %v216, 4294901760
  %v1025 = vsub.f32 %v216, %v1024
  %v1026 = vand.u32 %v1025, 4294901760
  %v1027 = vsub.f32 %v1025, %v1026
  %v1028 = vand.u32 %v1027, 4294901760
  %1029 = vmatpush1.msra.mxu0 %v1028
  %1030 = vmatprep.subr.mxu0 0.0
  %v1031 = vand.u32 %v217, 4294901760
  %v1032 = vsub.f32 %v217, %v1031
  %v1033 = vand.u32 %v1032, 4294901760
  %v1034 = vsub.f32 %v1032, %v1033
  %v1035 = vand.u32 %v1034, 4294901760
  %1036 = vmatpush1.msra.mxu0 %v1035
  %1037 = vmatprep.subr.mxu0 0.0
  %v1038 = vand.u32 %v218, 4294901760
  %v1039 = vsub.f32 %v218, %v1038
  %v1040 = vand.u32 %v1039, 4294901760
  %v1041 = vsub.f32 %v1039, %v1040
  %v1042 = vand.u32 %v1041, 4294901760
  %1043 = vmatpush1.msra.mxu0 %v1042
  %1044 = vmatprep.subr.mxu0 0.0
  %1045 = vmatpush1.msra.mxu0 0.0
  %1046 = vmatprep.subr.mxu0 0.0
  %1047 = vmatpush1.msra.mxu0 0.0
  %1048 = vmatprep.subr.mxu0 0.0
  %1049 = vmatpush1.msra.mxu0 0.0
  %1050 = vmatprep.subr.mxu0 0.0
  %1051 = vmatpush1.msra.mxu0 0.0
  %1052 = vmatprep.subr.mxu0 0.0
  %1053 = vmatpush1.msra.mxu0 0.0
  %1054 = vmatprep.subr.mxu0 0.0
  %1055 = vmatpush1.msra.mxu0 0.0
  %1056 = vmatprep.subr.mxu0 0.0
  %1057 = vmatpush1.msra.mxu0 0.0
  %1058 = vmatprep.subr.mxu0 0.0
  %1059 = vmatpush1.msra.mxu0 0.0
  %v1060 = vand.u32 %v770, 4294901760
  %1061 = vmatprep.mubr.f32.mxu0 %v1060
  %v1062 = vand.u32 %v193, 4294901760
  %1063 = vmatmul.mubr.f32.gmra.mrb[0].mxu0 %v1062
  %v1064 = vpop.f32.mrb[0].mxu0
  %v1065 = vadd.f32 %v873, %v1064
  %v1066 = vpop.f32.mrb[0].mxu0
  %1067 = vdwg.mxu0
  %1068 = vmatprep.subr.mxu0 0.0
  %v1069 = vand.u32 %v195, 4294901760
  %v1070 = vsub.f32 %v195, %v1069
  %1071 = vmatpush1.msra.mxu0 %v1070
  %1072 = vmatprep.subr.mxu0 0.0
  %v1073 = vand.u32 %v196, 4294901760
  %v1074 = vsub.f32 %v196, %v1073
  %1075 = vmatpush1.msra.mxu0 %v1074
  %1076 = vmatprep.subr.mxu0 0.0
  %v1077 = vand.u32 %v197, 4294901760
  %v1078 = vsub.f32 %v197, %v1077
  %1079 = vmatpush1.msra.mxu0 %v1078
  %1080 = vmatprep.subr.mxu0 0.0
  %v1081 = vand.u32 %v198, 4294901760
  %v1082 = vsub.f32 %v198, %v1081
  %1083 = vmatpush1.msra.mxu0 %v1082
  %1084 = vmatprep.subr.mxu0 0.0
  %v1085 = vand.u32 %v199, 4294901760
  %v1086 = vsub.f32 %v199, %v1085
  %1087 = vmatpush1.msra.mxu0 %v1086
  %1088 = vmatprep.subr.mxu0 0.0
  %v1089 = vand.u32 %v200, 4294901760
  %v1090 = vsub.f32 %v200, %v1089
  %1091 = vmatpush1.msra.mxu0 %v1090
  %1092 = vmatprep.subr.mxu0 0.0
  %v1093 = vand.u32 %v201, 4294901760
  %v1094 = vsub.f32 %v201, %v1093
  %1095 = vmatpush1.msra.mxu0 %v1094
  %1096 = vmatprep.subr.mxu0 0.0
  %v1097 = vand.u32 %v202, 4294901760
  %v1098 = vsub.f32 %v202, %v1097
  %1099 = vmatpush1.msra.mxu0 %v1098
  %1100 = vmatprep.subr.mxu0 0.0
  %v1101 = vand.u32 %v203, 4294901760
  %v1102 = vsub.f32 %v203, %v1101
  %1103 = vmatpush1.msra.mxu0 %v1102
  %1104 = vmatprep.subr.mxu0 0.0
  %v1105 = vand.u32 %v204, 4294901760
  %v1106 = vsub.f32 %v204, %v1105
  %1107 = vmatpush1.msra.mxu0 %v1106
  %1108 = vmatprep.subr.mxu0 0.0
  %v1109 = vand.u32 %v205, 4294901760
  %v1110 = vsub.f32 %v205, %v1109
  %1111 = vmatpush1.msra.mxu0 %v1110
  %1112 = vmatprep.subr.mxu0 0.0
  %v1113 = vand.u32 %v206, 4294901760
  %v1114 = vsub.f32 %v206, %v1113
  %1115 = vmatpush1.msra.mxu0 %v1114
  %1116 = vmatprep.subr.mxu0 0.0
  %v1117 = vand.u32 %v207, 4294901760
  %v1118 = vsub.f32 %v207, %v1117
  %1119 = vmatpush1.msra.mxu0 %v1118
  %1120 = vmatprep.subr.mxu0 0.0
  %v1121 = vand.u32 %v208, 4294901760
  %v1122 = vsub.f32 %v208, %v1121
  %1123 = vmatpush1.msra.mxu0 %v1122
  %1124 = vmatprep.subr.mxu0 0.0
  %v1125 = vand.u32 %v209, 4294901760
  %v1126 = vsub.f32 %v209, %v1125
  %1127 = vmatpush1.msra.mxu0 %v1126
  %1128 = vmatprep.subr.mxu0 0.0
  %v1129 = vand.u32 %v210, 4294901760
  %v1130 = vsub.f32 %v210, %v1129
  %1131 = vmatpush1.msra.mxu0 %v1130
  %1132 = vmatprep.subr.mxu0 0.0
  %v1133 = vand.u32 %v211, 4294901760
  %v1134 = vsub.f32 %v211, %v1133
  %1135 = vmatpush1.msra.mxu0 %v1134
  %1136 = vmatprep.subr.mxu0 0.0
  %v1137 = vand.u32 %v212, 4294901760
  %v1138 = vsub.f32 %v212, %v1137
  %1139 = vmatpush1.msra.mxu0 %v1138
  %1140 = vmatprep.subr.mxu0 0.0
  %v1141 = vand.u32 %v213, 4294901760
  %v1142 = vsub.f32 %v213, %v1141
  %1143 = vmatpush1.msra.mxu0 %v1142
  %1144 = vmatprep.subr.mxu0 0.0
  %v1145 = vand.u32 %v214, 4294901760
  %v1146 = vsub.f32 %v214, %v1145
  %1147 = vmatpush1.msra.mxu0 %v1146
  %1148 = vmatprep.subr.mxu0 0.0
  %v1149 = vand.u32 %v215, 4294901760
  %v1150 = vsub.f32 %v215, %v1149
  %1151 = vmatpush1.msra.mxu0 %v1150
  %1152 = vmatprep.subr.mxu0 0.0
  %v1153 = vand.u32 %v216, 4294901760
  %v1154 = vsub.f32 %v216, %v1153
  %1155 = vmatpush1.msra.mxu0 %v1154
  %1156 = vmatprep.subr.mxu0 0.0
  %v1157 = vand.u32 %v217, 4294901760
  %v1158 = vsub.f32 %v217, %v1157
  %1159 = vmatpush1.msra.mxu0 %v1158
  %1160 = vmatprep.subr.mxu0 0.0
  %v1161 = vand.u32 %v218, 4294901760
  %v1162 = vsub.f32 %v218, %v1161
  %1163 = vmatpush1.msra.mxu0 %v1162
  %1164 = vmatprep.subr.mxu0 0.0
  %1165 = vmatpush1.msra.mxu0 0.0
  %1166 = vmatprep.subr.mxu0 0.0
  %1167 = vmatpush1.msra.mxu0 0.0
  %1168 = vmatprep.subr.mxu0 0.0
  %1169 = vmatpush1.msra.mxu0 0.0
  %1170 = vmatprep.subr.mxu0 0.0
  %1171 = vmatpush1.msra.mxu0 0.0
  %1172 = vmatprep.subr.mxu0 0.0
  %1173 = vmatpush1.msra.mxu0 0.0
  %1174 = vmatprep.subr.mxu0 0.0
  %1175 = vmatpush1.msra.mxu0 0.0
  %1176 = vmatprep.subr.mxu0 0.0
  %1177 = vmatpush1.msra.mxu0 0.0
  %1178 = vmatprep.subr.mxu0 0.0
  %1179 = vmatpush1.msra.mxu0 0.0
  %v1180 = vand.u32 %v770, 4294901760
  %v1181 = vsub.f32 %v770, %v1180
  %1182 = vmatprep.mubr.f32.mxu0 %v1181
  %v1183 = vand.u32 %v193, 4294901760
  %v1184 = vsub.f32 %v193, %v1183
  %1185 = vmatmul.mubr.f32.gmra.mrb[0].mxu0 %v1184
  %v1186 = vpop.f32.mrb[0].mxu0
  %v1187 = vadd.f32 %v1065, %v1186
  %v1188 = vpop.f32.mrb[0].mxu0
  %1189 = vdwg.mxu0
  %1190 = vmatprep.subr.mxu0 0.0
  %v1191 = vand.u32 %v195, 4294901760
  %1192 = vmatpush1.msra.mxu0 %v1191
  %1193 = vmatprep.subr.mxu0 0.0
  %v1194 = vand.u32 %v196, 4294901760
  %1195 = vmatpush1.msra.mxu0 %v1194
  %1196 = vmatprep.subr.mxu0 0.0
  %v1197 = vand.u32 %v197, 4294901760
  %1198 = vmatpush1.msra.mxu0 %v1197
  %1199 = vmatprep.subr.mxu0 0.0
  %v1200 = vand.u32 %v198, 4294901760
  %1201 = vmatpush1.msra.mxu0 %v1200
  %1202 = vmatprep.subr.mxu0 0.0
  %v1203 = vand.u32 %v199, 4294901760
  %1204 = vmatpush1.msra.mxu0 %v1203
  %1205 = vmatprep.subr.mxu0 0.0
  %v1206 = vand.u32 %v200, 4294901760
  %1207 = vmatpush1.msra.mxu0 %v1206
  %1208 = vmatprep.subr.mxu0 0.0
  %v1209 = vand.u32 %v201, 4294901760
  %1210 = vmatpush1.msra.mxu0 %v1209
  %1211 = vmatprep.subr.mxu0 0.0
  %v1212 = vand.u32 %v202, 4294901760
  %1213 = vmatpush1.msra.mxu0 %v1212
  %1214 = vmatprep.subr.mxu0 0.0
  %v1215 = vand.u32 %v203, 4294901760
  %1216 = vmatpush1.msra.mxu0 %v1215
  %1217 = vmatprep.subr.mxu0 0.0
  %v1218 = vand.u32 %v204, 4294901760
  %1219 = vmatpush1.msra.mxu0 %v1218
  %1220 = vmatprep.subr.mxu0 0.0
  %v1221 = vand.u32 %v205, 4294901760
  %1222 = vmatpush1.msra.mxu0 %v1221
  %1223 = vmatprep.subr.mxu0 0.0
  %v1224 = vand.u32 %v206, 4294901760
  %1225 = vmatpush1.msra.mxu0 %v1224
  %1226 = vmatprep.subr.mxu0 0.0
  %v1227 = vand.u32 %v207, 4294901760
  %1228 = vmatpush1.msra.mxu0 %v1227
  %1229 = vmatprep.subr.mxu0 0.0
  %v1230 = vand.u32 %v208, 4294901760
  %1231 = vmatpush1.msra.mxu0 %v1230
  %1232 = vmatprep.subr.mxu0 0.0
  %v1233 = vand.u32 %v209, 4294901760
  %1234 = vmatpush1.msra.mxu0 %v1233
  %1235 = vmatprep.subr.mxu0 0.0
  %v1236 = vand.u32 %v210, 4294901760
  %1237 = vmatpush1.msra.mxu0 %v1236
  %1238 = vmatprep.subr.mxu0 0.0
  %v1239 = vand.u32 %v211, 4294901760
  %1240 = vmatpush1.msra.mxu0 %v1239
  %1241 = vmatprep.subr.mxu0 0.0
  %v1242 = vand.u32 %v212, 4294901760
  %1243 = vmatpush1.msra.mxu0 %v1242
  %1244 = vmatprep.subr.mxu0 0.0
  %v1245 = vand.u32 %v213, 4294901760
  %1246 = vmatpush1.msra.mxu0 %v1245
  %1247 = vmatprep.subr.mxu0 0.0
  %v1248 = vand.u32 %v214, 4294901760
  %1249 = vmatpush1.msra.mxu0 %v1248
  %1250 = vmatprep.subr.mxu0 0.0
  %v1251 = vand.u32 %v215, 4294901760
  %1252 = vmatpush1.msra.mxu0 %v1251
  %1253 = vmatprep.subr.mxu0 0.0
  %v1254 = vand.u32 %v216, 4294901760
  %1255 = vmatpush1.msra.mxu0 %v1254
  %1256 = vmatprep.subr.mxu0 0.0
  %v1257 = vand.u32 %v217, 4294901760
  %1258 = vmatpush1.msra.mxu0 %v1257
  %1259 = vmatprep.subr.mxu0 0.0
  %v1260 = vand.u32 %v218, 4294901760
  %1261 = vmatpush1.msra.mxu0 %v1260
  %1262 = vmatprep.subr.mxu0 0.0
  %1263 = vmatpush1.msra.mxu0 0.0
  %1264 = vmatprep.subr.mxu0 0.0
  %1265 = vmatpush1.msra.mxu0 0.0
  %1266 = vmatprep.subr.mxu0 0.0
  %1267 = vmatpush1.msra.mxu0 0.0
  %1268 = vmatprep.subr.mxu0 0.0
  %1269 = vmatpush1.msra.mxu0 0.0
  %1270 = vmatprep.subr.mxu0 0.0
  %1271 = vmatpush1.msra.mxu0 0.0
  %1272 = vmatprep.subr.mxu0 0.0
  %1273 = vmatpush1.msra.mxu0 0.0
  %1274 = vmatprep.subr.mxu0 0.0
  %1275 = vmatpush1.msra.mxu0 0.0
  %1276 = vmatprep.subr.mxu0 0.0
  %1277 = vmatpush1.msra.mxu0 0.0
  %v1278 = vand.u32 %v770, 4294901760
  %v1279 = vsub.f32 %v770, %v1278
  %v1280 = vand.u32 %v1279, 4294901760
  %1281 = vmatprep.mubr.f32.mxu0 %v1280
  %v1282 = vand.u32 %v193, 4294901760
  %v1283 = vsub.f32 %v193, %v1282
  %v1284 = vand.u32 %v1283, 4294901760
  %1285 = vmatmul.mubr.f32.gmra.mrb[0].mxu0 %v1284
  %v1286 = vpop.f32.mrb[0].mxu0
  %v1287 = vadd.f32 %v1187, %v1286
  %v1288 = vpop.f32.mrb[0].mxu0
  %1289 = vdwg.mxu0
  %1290 = vmatprep.subr.mxu0 0.0
  %v1291 = vand.u32 %v195, 4294901760
  %v1292 = vsub.f32 %v195, %v1291
  %v1293 = vand.u32 %v1292, 4294901760
  %1294 = vmatpush1.msra.mxu0 %v1293
  %1295 = vmatprep.subr.mxu0 0.0
  %v1296 = vand.u32 %v196, 4294901760
  %v1297 = vsub.f32 %v196, %v1296
  %v1298 = vand.u32 %v1297, 4294901760
  %1299 = vmatpush1.msra.mxu0 %v1298
  %1300 = vmatprep.subr.mxu0 0.0
  %v1301 = vand.u32 %v197, 4294901760
  %v1302 = vsub.f32 %v197, %v1301
  %v1303 = vand.u32 %v1302, 4294901760
  %1304 = vmatpush1.msra.mxu0 %v1303
  %1305 = vmatprep.subr.mxu0 0.0
  %v1306 = vand.u32 %v198, 4294901760
  %v1307 = vsub.f32 %v198, %v1306
  %v1308 = vand.u32 %v1307, 4294901760
  %1309 = vmatpush1.msra.mxu0 %v1308
  %1310 = vmatprep.subr.mxu0 0.0
  %v1311 = vand.u32 %v199, 4294901760
  %v1312 = vsub.f32 %v199, %v1311
  %v1313 = vand.u32 %v1312, 4294901760
  %1314 = vmatpush1.msra.mxu0 %v1313
  %1315 = vmatprep.subr.mxu0 0.0
  %v1316 = vand.u32 %v200, 4294901760
  %v1317 = vsub.f32 %v200, %v1316
  %v1318 = vand.u32 %v1317, 4294901760
  %1319 = vmatpush1.msra.mxu0 %v1318
  %1320 = vmatprep.subr.mxu0 0.0
  %v1321 = vand.u32 %v201, 4294901760
  %v1322 = vsub.f32 %v201, %v1321
  %v1323 = vand.u32 %v1322, 4294901760
  %1324 = vmatpush1.msra.mxu0 %v1323
  %1325 = vmatprep.subr.mxu0 0.0
  %v1326 = vand.u32 %v202, 4294901760
  %v1327 = vsub.f32 %v202, %v1326
  %v1328 = vand.u32 %v1327, 4294901760
  %1329 = vmatpush1.msra.mxu0 %v1328
  %1330 = vmatprep.subr.mxu0 0.0
  %v1331 = vand.u32 %v203, 4294901760
  %v1332 = vsub.f32 %v203, %v1331
  %v1333 = vand.u32 %v1332, 4294901760
  %1334 = vmatpush1.msra.mxu0 %v1333
  %1335 = vmatprep.subr.mxu0 0.0
  %v1336 = vand.u32 %v204, 4294901760
  %v1337 = vsub.f32 %v204, %v1336
  %v1338 = vand.u32 %v1337, 4294901760
  %1339 = vmatpush1.msra.mxu0 %v1338
  %1340 = vmatprep.subr.mxu0 0.0
  %v1341 = vand.u32 %v205, 4294901760
  %v1342 = vsub.f32 %v205, %v1341
  %v1343 = vand.u32 %v1342, 4294901760
  %1344 = vmatpush1.msra.mxu0 %v1343
  %1345 = vmatprep.subr.mxu0 0.0
  %v1346 = vand.u32 %v206, 4294901760
  %v1347 = vsub.f32 %v206, %v1346
  %v1348 = vand.u32 %v1347, 4294901760
  %1349 = vmatpush1.msra.mxu0 %v1348
  %1350 = vmatprep.subr.mxu0 0.0
  %v1351 = vand.u32 %v207, 4294901760
  %v1352 = vsub.f32 %v207, %v1351
  %v1353 = vand.u32 %v1352, 4294901760
  %1354 = vmatpush1.msra.mxu0 %v1353
  %1355 = vmatprep.subr.mxu0 0.0
  %v1356 = vand.u32 %v208, 4294901760
  %v1357 = vsub.f32 %v208, %v1356
  %v1358 = vand.u32 %v1357, 4294901760
  %1359 = vmatpush1.msra.mxu0 %v1358
  %1360 = vmatprep.subr.mxu0 0.0
  %v1361 = vand.u32 %v209, 4294901760
  %v1362 = vsub.f32 %v209, %v1361
  %v1363 = vand.u32 %v1362, 4294901760
  %1364 = vmatpush1.msra.mxu0 %v1363
  %1365 = vmatprep.subr.mxu0 0.0
  %v1366 = vand.u32 %v210, 4294901760
  %v1367 = vsub.f32 %v210, %v1366
  %v1368 = vand.u32 %v1367, 4294901760
  %1369 = vmatpush1.msra.mxu0 %v1368
  %1370 = vmatprep.subr.mxu0 0.0
  %v1371 = vand.u32 %v211, 4294901760
  %v1372 = vsub.f32 %v211, %v1371
  %v1373 = vand.u32 %v1372, 4294901760
  %1374 = vmatpush1.msra.mxu0 %v1373
  %1375 = vmatprep.subr.mxu0 0.0
  %v1376 = vand.u32 %v212, 4294901760
  %v1377 = vsub.f32 %v212, %v1376
  %v1378 = vand.u32 %v1377, 4294901760
  %1379 = vmatpush1.msra.mxu0 %v1378
  %1380 = vmatprep.subr.mxu0 0.0
  %v1381 = vand.u32 %v213, 4294901760
  %v1382 = vsub.f32 %v213, %v1381
  %v1383 = vand.u32 %v1382, 4294901760
  %1384 = vmatpush1.msra.mxu0 %v1383
  %1385 = vmatprep.subr.mxu0 0.0
  %v1386 = vand.u32 %v214, 4294901760
  %v1387 = vsub.f32 %v214, %v1386
  %v1388 = vand.u32 %v1387, 4294901760
  %1389 = vmatpush1.msra.mxu0 %v1388
  %1390 = vmatprep.subr.mxu0 0.0
  %v1391 = vand.u32 %v215, 4294901760
  %v1392 = vsub.f32 %v215, %v1391
  %v1393 = vand.u32 %v1392, 4294901760
  %1394 = vmatpush1.msra.mxu0 %v1393
  %1395 = vmatprep.subr.mxu0 0.0
  %v1396 = vand.u32 %v216, 4294901760
  %v1397 = vsub.f32 %v216, %v1396
  %v1398 = vand.u32 %v1397, 4294901760
  %1399 = vmatpush1.msra.mxu0 %v1398
  %1400 = vmatprep.subr.mxu0 0.0
  %v1401 = vand.u32 %v217, 4294901760
  %v1402 = vsub.f32 %v217, %v1401
  %v1403 = vand.u32 %v1402, 4294901760
  %1404 = vmatpush1.msra.mxu0 %v1403
  %1405 = vmatprep.subr.mxu0 0.0
  %v1406 = vand.u32 %v218, 4294901760
  %v1407 = vsub.f32 %v218, %v1406
  %v1408 = vand.u32 %v1407, 4294901760
  %1409 = vmatpush1.msra.mxu0 %v1408
  %1410 = vmatprep.subr.mxu0 0.0
  %1411 = vmatpush1.msra.mxu0 0.0
  %1412 = vmatprep.subr.mxu0 0.0
  %1413 = vmatpush1.msra.mxu0 0.0
  %1414 = vmatprep.subr.mxu0 0.0
  %1415 = vmatpush1.msra.mxu0 0.0
  %1416 = vmatprep.subr.mxu0 0.0
  %1417 = vmatpush1.msra.mxu0 0.0
  %1418 = vmatprep.subr.mxu0 0.0
  %1419 = vmatpush1.msra.mxu0 0.0
  %1420 = vmatprep.subr.mxu0 0.0
  %1421 = vmatpush1.msra.mxu0 0.0
  %1422 = vmatprep.subr.mxu0 0.0
  %1423 = vmatpush1.msra.mxu0 0.0
  %1424 = vmatprep.subr.mxu0 0.0
  %1425 = vmatpush1.msra.mxu0 0.0
  %v1426 = vand.u32 %v770, 4294901760
  %1427 = vmatprep.mubr.f32.mxu0 %v1426
  %v1428 = vand.u32 %v193, 4294901760
  %1429 = vmatmul.mubr.f32.gmra.mrb[0].mxu0 %v1428
  %v1430 = vpop.f32.mrb[0].mxu0
  %v1431 = vadd.f32 %v1287, %v1430
  %v1432 = vpop.f32.mrb[0].mxu0
  %1433 = vdwg.mxu0
  %1434 = vmatprep.subr.mxu0 0.0
  %v1435 = vand.u32 %v195, 4294901760
  %1436 = vmatpush1.msra.mxu0 %v1435
  %1437 = vmatprep.subr.mxu0 0.0
  %v1438 = vand.u32 %v196, 4294901760
  %1439 = vmatpush1.msra.mxu0 %v1438
  %1440 = vmatprep.subr.mxu0 0.0
  %v1441 = vand.u32 %v197, 4294901760
  %1442 = vmatpush1.msra.mxu0 %v1441
  %1443 = vmatprep.subr.mxu0 0.0
  %v1444 = vand.u32 %v198, 4294901760
  %1445 = vmatpush1.msra.mxu0 %v1444
  %1446 = vmatprep.subr.mxu0 0.0
  %v1447 = vand.u32 %v199, 4294901760
  %1448 = vmatpush1.msra.mxu0 %v1447
  %1449 = vmatprep.subr.mxu0 0.0
  %v1450 = vand.u32 %v200, 4294901760
  %1451 = vmatpush1.msra.mxu0 %v1450
  %1452 = vmatprep.subr.mxu0 0.0
  %v1453 = vand.u32 %v201, 4294901760
  %1454 = vmatpush1.msra.mxu0 %v1453
  %1455 = vmatprep.subr.mxu0 0.0
  %v1456 = vand.u32 %v202, 4294901760
  %1457 = vmatpush1.msra.mxu0 %v1456
  %1458 = vmatprep.subr.mxu0 0.0
  %v1459 = vand.u32 %v203, 4294901760
  %1460 = vmatpush1.msra.mxu0 %v1459
  %1461 = vmatprep.subr.mxu0 0.0
  %v1462 = vand.u32 %v204, 4294901760
  %1463 = vmatpush1.msra.mxu0 %v1462
  %1464 = vmatprep.subr.mxu0 0.0
  %v1465 = vand.u32 %v205, 4294901760
  %1466 = vmatpush1.msra.mxu0 %v1465
  %1467 = vmatprep.subr.mxu0 0.0
  %v1468 = vand.u32 %v206, 4294901760
  %1469 = vmatpush1.msra.mxu0 %v1468
  %1470 = vmatprep.subr.mxu0 0.0
  %v1471 = vand.u32 %v207, 4294901760
  %1472 = vmatpush1.msra.mxu0 %v1471
  %1473 = vmatprep.subr.mxu0 0.0
  %v1474 = vand.u32 %v208, 4294901760
  %1475 = vmatpush1.msra.mxu0 %v1474
  %1476 = vmatprep.subr.mxu0 0.0
  %v1477 = vand.u32 %v209, 4294901760
  %1478 = vmatpush1.msra.mxu0 %v1477
  %1479 = vmatprep.subr.mxu0 0.0
  %v1480 = vand.u32 %v210, 4294901760
  %1481 = vmatpush1.msra.mxu0 %v1480
  %1482 = vmatprep.subr.mxu0 0.0
  %v1483 = vand.u32 %v211, 4294901760
  %1484 = vmatpush1.msra.mxu0 %v1483
  %1485 = vmatprep.subr.mxu0 0.0
  %v1486 = vand.u32 %v212, 4294901760
  %1487 = vmatpush1.msra.mxu0 %v1486
  %1488 = vmatprep.subr.mxu0 0.0
  %v1489 = vand.u32 %v213, 4294901760
  %1490 = vmatpush1.msra.mxu0 %v1489
  %1491 = vmatprep.subr.mxu0 0.0
  %v1492 = vand.u32 %v214, 4294901760
  %1493 = vmatpush1.msra.mxu0 %v1492
  %1494 = vmatprep.subr.mxu0 0.0
  %v1495 = vand.u32 %v215, 4294901760
  %1496 = vmatpush1.msra.mxu0 %v1495
  %1497 = vmatprep.subr.mxu0 0.0
  %v1498 = vand.u32 %v216, 4294901760
  %1499 = vmatpush1.msra.mxu0 %v1498
  %1500 = vmatprep.subr.mxu0 0.0
  %v1501 = vand.u32 %v217, 4294901760
  %1502 = vmatpush1.msra.mxu0 %v1501
  %1503 = vmatprep.subr.mxu0 0.0
  %v1504 = vand.u32 %v218, 4294901760
  %1505 = vmatpush1.msra.mxu0 %v1504
  %1506 = vmatprep.subr.mxu0 0.0
  %1507 = vmatpush1.msra.mxu0 0.0
  %1508 = vmatprep.subr.mxu0 0.0
  %1509 = vmatpush1.msra.mxu0 0.0
  %1510 = vmatprep.subr.mxu0 0.0
  %1511 = vmatpush1.msra.mxu0 0.0
  %1512 = vmatprep.subr.mxu0 0.0
  %1513 = vmatpush1.msra.mxu0 0.0
  %1514 = vmatprep.subr.mxu0 0.0
  %1515 = vmatpush1.msra.mxu0 0.0
  %1516 = vmatprep.subr.mxu0 0.0
  %1517 = vmatpush1.msra.mxu0 0.0
  %1518 = vmatprep.subr.mxu0 0.0
  %1519 = vmatpush1.msra.mxu0 0.0
  %1520 = vmatprep.subr.mxu0 0.0
  %1521 = vmatpush1.msra.mxu0 0.0
  %v1522 = vand.u32 %v770, 4294901760
  %1523 = vmatprep.mubr.f32.mxu0 %v1522
  %v1524 = vand.u32 %v193, 4294901760
  %1525 = vmatmul.mubr.f32.gmra.mrb[0].mxu0 %v1524
  %v1526 = vpop.f32.mrb[0].mxu0
  %v1527 = vadd.f32 %v1431, %v1526
  %v1528 = vpop.f32.mrb[0].mxu0
  %1529 = vdwg.mxu0
  %1530 = vst [vmem:[%s4] sm:$0xff] %v1527
  // Predicated region
  $region18: #{_forward.1} parent=0 // pred_check
    _
  $region19: #{_forward.1} parent=0 // pred_check_branch
    %1532 = sbr.rel (0) target = $region21
  $region20: #{_forward.1} parent=0 // pred_region
    _
  $region21: #{_forward.1} parent=0 // pred_fallthru
    _
  // Predicated region
  $region22: #{_forward.1} parent=0 // pred_check
    _
  $region23: #{_forward.1} parent=0 // pred_check_branch
    %1534 = sbr.rel (0) target = $region25
  $region24: #{_forward.1} parent=0 // pred_region
    _
  $region25: #{_forward.1} parent=0 // pred_fallthru
    _

</llo_original>
